<compile_context>
chip_gen: v7x
topology: tpu7x:2x2x1
jax: 0.10.0
libtpu: 0.0.40
codegen_flags: <defaults>
</compile_context>

<pallas_src>
import functools

import jax
import jax.numpy as jnp
from jax import lax
from jax.experimental import pallas as pl
from jax.experimental.pallas import tpu as pltpu


def _mkrb_kernel(x_ref, w1_ref, b1_ref, w2_ref, b2_ref, out_ref,
                 stack1_ref, stack2_ref, *, H, W, C, L):
    """One grid step: a (C, L) lane-dense slab holding one or more whole images."""
    HW = H * W

    # ---- hoisted per-lane coordinates & boundary masks (shared by both branches) ----
    q_glob = lax.broadcasted_iota(jnp.int32, (1, L), 1)
    # per-image flattened pixel index (batch may be folded into the lane axis)
    q = (q_glob & (HW - 1)) if (HW & (HW - 1)) == 0 else (q_glob % HW)
    w_idx = (q & (W - 1)) if (W & (W - 1)) == 0 else (q % W)

    P_MAX = 2  # max(3 // 2, 5 // 2)
    h_mask = {0: None}
    w_mask = {0: None}
    for d in range(1, P_MAX + 1):
        h_mask[-d] = q >= d * W            # source row h - d >= 0
        h_mask[d] = q < (H - d) * W        # source row h + d <  H
        w_mask[-d] = w_idx >= d            # source col w - d >= 0
        w_mask[d] = w_idx < (W - d)        # source col w + d <  W

    def conv_bn_relu_res(inp, w_ref, b_ref, stack_ref, K):
        """ReLU( ReLU(conv_KxK(inp) * bn_scale + bn_bias) + inp ) via one im2col matmul."""
        P = K // 2
        k = 0
        for kh in range(K):
            for kw in range(K):
                dh, dw = kh - P, kw - P
                if dh == 0 and dw == 0:
                    shifted = inp
                else:
                    d = dh * W + dw
                    rolled = pltpu.roll(inp, shift=(-d) % L, axis=1)
                    hm, wm = h_mask[dh], w_mask[dw]
                    if hm is None:
                        m = wm
                    elif wm is None:
                        m = hm
                    else:
                        m = jnp.logical_and(hm, wm)
                    shifted = jnp.where(m, rolled, 0.0)   # virtual zero padding
                stack_ref[pl.ds(k * C, C), :] = shifted   # im2col row block for tap k
                k += 1
        # Single MXU matmul per branch: (C, K*K*C) @ (K*K*C, L), f32 accumulation.
        acc = jnp.dot(w_ref[...], stack_ref[...], preferred_element_type=jnp.float32)
        y = jnp.maximum(acc + b_ref[...], 0.0)            # folded BN bias + ReLU
        return jnp.maximum(y + inp, 0.0)                  # residual add + ReLU

    x = x_ref[...]                                        # (C, L)
    fused = conv_bn_relu_res(x, w1_ref, b1_ref, stack1_ref, 3)
    # Dropout2d(p) is the identity at inference time.
    out_ref[...] = conv_bn_relu_res(fused, w2_ref, b2_ref, stack2_ref, 5)


def _default_images_per_step(n):
    """v7x has 2 TensorCores -> keep a 2-wide parallel grid; v5e/v6e -> fold the batch."""
    try:
        kind = jax.devices()[0].device_kind.lower()
    except Exception:
        kind = ""
    if "v7" in kind or "7x" in kind:
        return 1
    return n


def mkrb_forward(x_nchw, params, *, images_per_step=None):
    """MKRB forward. Input/output in PyTorch NCHW layout (inference mode)."""
    N, C, H, W = x_nchw.shape
    HW = H * W
    if images_per_step is None:
        images_per_step = _default_images_per_step(N)
    images_per_step = max(1, min(images_per_step, N))
    while N % images_per_step != 0:
        images_per_step -= 1
    G = N // images_per_step
    L = images_per_step * HW

    # Lane-dense slabs: (groups, C, images_per_step*H*W).  Pure layout plumbing.
    x_flat = (x_nchw.astype(jnp.float32)
              .reshape(G, images_per_step, C, HW)
              .transpose(0, 2, 1, 3)
              .reshape(G, C, L))

    K1C, K2C = 9 * C, 25 * C
    kernel = functools.partial(_mkrb_kernel, H=H, W=W, C=C, L=L)

    out_flat = pl.pallas_call(
        kernel,
        out_shape=jax.ShapeDtypeStruct((G, C, L), jnp.float32),
        grid=(G,),
        in_specs=[
            pl.BlockSpec((pl.Squeezed(), C, L), lambda g: (g, 0, 0)),  # x slab
            pl.BlockSpec((C, K1C), lambda g: (0, 0)),                  # conv1 weights (scale-folded)
            pl.BlockSpec((C, 1), lambda g: (0, 0)),                    # conv1/BN1 bias
            pl.BlockSpec((C, K2C), lambda g: (0, 0)),                  # conv2 weights (scale-folded)
            pl.BlockSpec((C, 1), lambda g: (0, 0)),                    # conv2/BN2 bias
        ],
        out_specs=pl.BlockSpec((pl.Squeezed(), C, L), lambda g: (g, 0, 0)),
        scratch_shapes=[
            pltpu.VMEM((K1C, L), jnp.float32),   # im2col stack, 3x3 branch
            pltpu.VMEM((K2C, L), jnp.float32),   # im2col stack, 5x5 branch
        ],
        compiler_params=pltpu.CompilerParams(dimension_semantics=("parallel",)),
    )(x_flat, params['w1'], params['b1'], params['w2'], params['b2'])

    return (out_flat.reshape(G, C, images_per_step, HW)
            .transpose(0, 2, 1, 3)
            .reshape(N, C, H, W))


# ---------------- host-side parameter preparation ----------------
def _fold_bn_into_conv(w_oihw, conv_bias, gamma, beta, mean, var, eps=1e-5):
    """Fold BN scale into conv weights; return lane-dense (Cout, K*K*Cin) matrix + (Cout,1) bias."""
    c_out, c_in, K, _ = w_oihw.shape
    scale = gamma / jnp.sqrt(var + eps)                               # (Cout,)
    w_scaled = w_oihw * scale[:, None, None, None]
    # column index = (kh*K + kw)*Cin + ci  -- matches the kernel's im2col row order
    w_mat = jnp.transpose(w_scaled, (0, 2, 3, 1)).reshape(c_out, K * K * c_in)
    bias = (conv_bias - mean) * scale + beta                          # (Cout,)
    return w_mat, bias[:, None]


def init_mkrb_params(key, channels):
    """Deterministic synthetic parameters matching nn.Conv2d / nn.BatchNorm2d shapes."""
    C = channels
    keys = jax.random.split(key, 12)

    def conv_params(kw_key, kb_key, K):
        w = 0.1 * jax.random.normal(kw_key, (C, C, K, K), jnp.float32)   # (Cout,Cin,K,K)
        b = 0.1 * jax.random.normal(kb_key, (C,), jnp.float32)
        return w, b

    def bn_params(kg, kb2, km, kv):
        gamma = 1.0 + 0.1 * jax.random.normal(kg, (C,), jnp.float32)
        beta = 0.1 * jax.random.normal(kb2, (C,), jnp.float32)
        mean = 0.1 * jax.random.normal(km, (C,), jnp.float32)
        var = 0.5 + jnp.abs(jax.random.normal(kv, (C,), jnp.float32))
        return gamma, beta, mean, var

    w1, cb1 = conv_params(keys[0], keys[1], 3)
    bn1 = bn_params(keys[2], keys[3], keys[4], keys[5])
    w2, cb2 = conv_params(keys[6], keys[7], 5)
    bn2 = bn_params(keys[8], keys[9], keys[10], keys[11])
    return dict(conv1_w=w1, conv1_b=cb1, bn1=bn1, conv2_w=w2, conv2_b=cb2, bn2=bn2)


def prepare_mkrb_params(raw):
    w1, b1 = _fold_bn_into_conv(raw['conv1_w'], raw['conv1_b'], *raw['bn1'])
    w2, b2 = _fold_bn_into_conv(raw['conv2_w'], raw['conv2_b'], *raw['bn2'])
    return dict(w1=w1, b1=b1, w2=w2, b2=b2)


# ---------------- pure-JAX reference (unfolded conv + BN) for verification ----------------
def _ref_conv_bn_relu(x, w_oihw, conv_bias, gamma, beta, mean, var, K, eps=1e-5):
    C = x.shape[1]
    y = lax.conv_general_dilated(
        x, w_oihw, window_strides=(1, 1),
        padding=[(K // 2, K // 2), (K // 2, K // 2)],
        dimension_numbers=('NCHW', 'OIHW', 'NCHW'))
    y = y + conv_bias.reshape(1, C, 1, 1)
    y = (y - mean.reshape(1, C, 1, 1)) / jnp.sqrt(var.reshape(1, C, 1, 1) + eps)
    y = gamma.reshape(1, C, 1, 1) * y + beta.reshape(1, C, 1, 1)
    return jnp.maximum(y, 0.0)


def mkrb_reference(x_nchw, raw):
    x = x_nchw.astype(jnp.float32)
    y0 = _ref_conv_bn_relu(x, raw['conv1_w'], raw['conv1_b'], *raw['bn1'], 3)
    fused = jnp.maximum(y0 + x, 0.0)
    y1 = _ref_conv_bn_relu(fused, raw['conv2_w'], raw['conv2_b'], *raw['bn2'], 5)
    return jnp.maximum(y1 + fused, 0.0)


if __name__ == "__main__":
    key = jax.random.PRNGKey(0)
    k_x, k_p = jax.random.split(key)

    N, C, H, W = 2, 8, 16, 16            # residual path requires in_ch == out_ch
    x = jax.random.normal(k_x, (N, C, H, W), jnp.float32)
    raw_params = init_mkrb_params(k_p, C)
    params = prepare_mkrb_params(raw_params)

    out = jax.jit(mkrb_forward)(x, params)
    out = jax.block_until_ready(out)

    ref = mkrb_reference(x, raw_params)
    assert out.shape == (N, C, H, W)
    assert jnp.allclose(out, ref, atol=1e-4, rtol=1e-4), "mismatch vs reference"

    print("KERNEL_OK")
</pallas_src>

<mosaic_0001>
module attributes {stable_mosaic.version = 11 : i64} {
  func.func @_mkrb_kernel(%arg0: i32, %arg1: memref<1x8x512xf32, #tpu.memory_space<vmem>>, %arg2: memref<8x72xf32, #tpu.memory_space<vmem>>, %arg3: memref<8x1xf32, #tpu.memory_space<vmem>>, %arg4: memref<8x200xf32, #tpu.memory_space<vmem>>, %arg5: memref<8x1xf32, #tpu.memory_space<vmem>>, %arg6: memref<1x8x512xf32, #tpu.memory_space<vmem>>, %arg7: memref<72x512xf32, #tpu.memory_space<vmem>>, %arg8: memref<200x512xf32, #tpu.memory_space<vmem>>) attributes {dimension_semantics = [#tpu.dimension_semantics<parallel>], iteration_bounds = array<i64: 1>, scalar_prefetch = 0 : i64, scratch_operands = 2 : i64, tpu.core_type = #tpu.core_type<tc>, window_params = [{transform_indices = @transform_0, window_bounds = array<i64: 1, 8, 512>}, {pipeline_mode = #tpu.pipeline_mode<synchronous>, transform_indices = @transform_1, window_bounds = array<i64: 8, 72>}, {pipeline_mode = #tpu.pipeline_mode<synchronous>, transform_indices = @transform_2, window_bounds = array<i64: 8, 1>}, {pipeline_mode = #tpu.pipeline_mode<synchronous>, transform_indices = @transform_3, window_bounds = array<i64: 8, 200>}, {pipeline_mode = #tpu.pipeline_mode<synchronous>, transform_indices = @transform_4, window_bounds = array<i64: 8, 1>}, {transform_indices = @transform_5, window_bounds = array<i64: 1, 8, 512>}]} {
    %0 = tpu.iota {dimensions = array<i32: 1>} : vector<1x512xi32>
    %c255_i32 = arith.constant 255 : i32
    %1 = vector.broadcast %c255_i32 : i32 to vector<1x512xi32>
    %2 = arith.andi %0, %1 : vector<1x512xi32>
    %c15_i32 = arith.constant 15 : i32
    %3 = vector.broadcast %c15_i32 : i32 to vector<1x512xi32>
    %4 = arith.andi %2, %3 : vector<1x512xi32>
    %c16_i32 = arith.constant 16 : i32
    %5 = vector.broadcast %c16_i32 : i32 to vector<1x512xi32>
    %6 = arith.cmpi sge, %2, %5 : vector<1x512xi32>
    %c240_i32 = arith.constant 240 : i32
    %7 = vector.broadcast %c240_i32 : i32 to vector<1x512xi32>
    %8 = arith.cmpi slt, %2, %7 : vector<1x512xi32>
    %c1_i32 = arith.constant 1 : i32
    %9 = vector.broadcast %c1_i32 : i32 to vector<1x512xi32>
    %10 = arith.cmpi sge, %4, %9 : vector<1x512xi32>
    %c15_i32_0 = arith.constant 15 : i32
    %11 = vector.broadcast %c15_i32_0 : i32 to vector<1x512xi32>
    %12 = arith.cmpi slt, %4, %11 : vector<1x512xi32>
    %c32_i32 = arith.constant 32 : i32
    %13 = vector.broadcast %c32_i32 : i32 to vector<1x512xi32>
    %14 = arith.cmpi sge, %2, %13 : vector<1x512xi32>
    %c224_i32 = arith.constant 224 : i32
    %15 = vector.broadcast %c224_i32 : i32 to vector<1x512xi32>
    %16 = arith.cmpi slt, %2, %15 : vector<1x512xi32>
    %c2_i32 = arith.constant 2 : i32
    %17 = vector.broadcast %c2_i32 : i32 to vector<1x512xi32>
    %18 = arith.cmpi sge, %4, %17 : vector<1x512xi32>
    %c14_i32 = arith.constant 14 : i32
    %19 = vector.broadcast %c14_i32 : i32 to vector<1x512xi32>
    %20 = arith.cmpi slt, %4, %19 : vector<1x512xi32>
    %c0 = arith.constant 0 : index
    %c0_1 = arith.constant 0 : index
    %c0_2 = arith.constant 0 : index
    %21 = vector.load %arg1[%c0, %c0_1, %c0_2] : memref<1x8x512xf32, #tpu.memory_space<vmem>>, vector<1x8x512xf32>
    %22 = vector.shape_cast %21 : vector<1x8x512xf32> to vector<8x512xf32>
    %c17_i32 = arith.constant 17 : i32
    %23 = tpu.dynamic_rotate %22 by %c17_i32 dim 1 : vector<8x512xf32>, i32 -> vector<8x512xf32>
    %24 = arith.andi %6, %10 : vector<1x512xi1>
    %cst = arith.constant 0.000000e+00 : f32
    %25 = vector.shape_cast %24 : vector<1x512xi1> to vector<1x512xi1>
    %26 = vector.broadcast %25 : vector<1x512xi1> to vector<8x512xi1>
    %27 = vector.broadcast %cst : f32 to vector<8x512xf32>
    %28 = arith.select %26, %23, %27 : vector<8x512xi1>, vector<8x512xf32>
    %c0_3 = arith.constant 0 : index
    %c0_4 = arith.constant 0 : index
    %29 = vector.load %arg7[%c0_3, %c0_4] : memref<72x512xf32, #tpu.memory_space<vmem>>, vector<8x512xf32>
    tpu.vector_store %arg7[%c0_3, %c0_4], %28 {strides = array<i32>} : memref<72x512xf32, #tpu.memory_space<vmem>>, vector<8x512xf32>,
    %c16_i32_5 = arith.constant 16 : i32
    %30 = tpu.dynamic_rotate %22 by %c16_i32_5 dim 1 : vector<8x512xf32>, i32 -> vector<8x512xf32>
    %cst_6 = arith.constant 0.000000e+00 : f32
    %31 = vector.shape_cast %6 : vector<1x512xi1> to vector<1x512xi1>
    %32 = vector.broadcast %31 : vector<1x512xi1> to vector<8x512xi1>
    %33 = vector.broadcast %cst_6 : f32 to vector<8x512xf32>
    %34 = arith.select %32, %30, %33 : vector<8x512xi1>, vector<8x512xf32>
    %c8 = arith.constant 8 : index
    %c0_7 = arith.constant 0 : index
    %35 = vector.load %arg7[%c8, %c0_7] : memref<72x512xf32, #tpu.memory_space<vmem>>, vector<8x512xf32>
    tpu.vector_store %arg7[%c8, %c0_7], %34 {strides = array<i32>} : memref<72x512xf32, #tpu.memory_space<vmem>>, vector<8x512xf32>,
    %c15_i32_8 = arith.constant 15 : i32
    %36 = tpu.dynamic_rotate %22 by %c15_i32_8 dim 1 : vector<8x512xf32>, i32 -> vector<8x512xf32>
    %37 = arith.andi %6, %12 : vector<1x512xi1>
    %cst_9 = arith.constant 0.000000e+00 : f32
    %38 = vector.shape_cast %37 : vector<1x512xi1> to vector<1x512xi1>
    %39 = vector.broadcast %38 : vector<1x512xi1> to vector<8x512xi1>
    %40 = vector.broadcast %cst_9 : f32 to vector<8x512xf32>
    %41 = arith.select %39, %36, %40 : vector<8x512xi1>, vector<8x512xf32>
    %c16 = arith.constant 16 : index
    %c0_10 = arith.constant 0 : index
    %42 = vector.load %arg7[%c16, %c0_10] : memref<72x512xf32, #tpu.memory_space<vmem>>, vector<8x512xf32>
    tpu.vector_store %arg7[%c16, %c0_10], %41 {strides = array<i32>} : memref<72x512xf32, #tpu.memory_space<vmem>>, vector<8x512xf32>,
    %c1_i32_11 = arith.constant 1 : i32
    %43 = tpu.dynamic_rotate %22 by %c1_i32_11 dim 1 : vector<8x512xf32>, i32 -> vector<8x512xf32>
    %cst_12 = arith.constant 0.000000e+00 : f32
    %44 = vector.shape_cast %10 : vector<1x512xi1> to vector<1x512xi1>
    %45 = vector.broadcast %44 : vector<1x512xi1> to vector<8x512xi1>
    %46 = vector.broadcast %cst_12 : f32 to vector<8x512xf32>
    %47 = arith.select %45, %43, %46 : vector<8x512xi1>, vector<8x512xf32>
    %c24 = arith.constant 24 : index
    %c0_13 = arith.constant 0 : index
    %48 = vector.load %arg7[%c24, %c0_13] : memref<72x512xf32, #tpu.memory_space<vmem>>, vector<8x512xf32>
    tpu.vector_store %arg7[%c24, %c0_13], %47 {strides = array<i32>} : memref<72x512xf32, #tpu.memory_space<vmem>>, vector<8x512xf32>,
    %c32 = arith.constant 32 : index
    %c0_14 = arith.constant 0 : index
    %49 = vector.load %arg7[%c32, %c0_14] : memref<72x512xf32, #tpu.memory_space<vmem>>, vector<8x512xf32>
    tpu.vector_store %arg7[%c32, %c0_14], %22 {strides = array<i32>} : memref<72x512xf32, #tpu.memory_space<vmem>>, vector<8x512xf32>,
    %c511_i32 = arith.constant 511 : i32
    %50 = tpu.dynamic_rotate %22 by %c511_i32 dim 1 : vector<8x512xf32>, i32 -> vector<8x512xf32>
    %cst_15 = arith.constant 0.000000e+00 : f32
    %51 = vector.shape_cast %12 : vector<1x512xi1> to vector<1x512xi1>
    %52 = vector.broadcast %51 : vector<1x512xi1> to vector<8x512xi1>
    %53 = vector.broadcast %cst_15 : f32 to vector<8x512xf32>
    %54 = arith.select %52, %50, %53 : vector<8x512xi1>, vector<8x512xf32>
    %c40 = arith.constant 40 : index
    %c0_16 = arith.constant 0 : index
    %55 = vector.load %arg7[%c40, %c0_16] : memref<72x512xf32, #tpu.memory_space<vmem>>, vector<8x512xf32>
    tpu.vector_store %arg7[%c40, %c0_16], %54 {strides = array<i32>} : memref<72x512xf32, #tpu.memory_space<vmem>>, vector<8x512xf32>,
    %c497_i32 = arith.constant 497 : i32
    %56 = tpu.dynamic_rotate %22 by %c497_i32 dim 1 : vector<8x512xf32>, i32 -> vector<8x512xf32>
    %57 = arith.andi %8, %10 : vector<1x512xi1>
    %cst_17 = arith.constant 0.000000e+00 : f32
    %58 = vector.shape_cast %57 : vector<1x512xi1> to vector<1x512xi1>
    %59 = vector.broadcast %58 : vector<1x512xi1> to vector<8x512xi1>
    %60 = vector.broadcast %cst_17 : f32 to vector<8x512xf32>
    %61 = arith.select %59, %56, %60 : vector<8x512xi1>, vector<8x512xf32>
    %c48 = arith.constant 48 : index
    %c0_18 = arith.constant 0 : index
    %62 = vector.load %arg7[%c48, %c0_18] : memref<72x512xf32, #tpu.memory_space<vmem>>, vector<8x512xf32>
    tpu.vector_store %arg7[%c48, %c0_18], %61 {strides = array<i32>} : memref<72x512xf32, #tpu.memory_space<vmem>>, vector<8x512xf32>,
    %c496_i32 = arith.constant 496 : i32
    %63 = tpu.dynamic_rotate %22 by %c496_i32 dim 1 : vector<8x512xf32>, i32 -> vector<8x512xf32>
    %cst_19 = arith.constant 0.000000e+00 : f32
    %64 = vector.shape_cast %8 : vector<1x512xi1> to vector<1x512xi1>
    %65 = vector.broadcast %64 : vector<1x512xi1> to vector<8x512xi1>
    %66 = vector.broadcast %cst_19 : f32 to vector<8x512xf32>
    %67 = arith.select %65, %63, %66 : vector<8x512xi1>, vector<8x512xf32>
    %c56 = arith.constant 56 : index
    %c0_20 = arith.constant 0 : index
    %68 = vector.load %arg7[%c56, %c0_20] : memref<72x512xf32, #tpu.memory_space<vmem>>, vector<8x512xf32>
    tpu.vector_store %arg7[%c56, %c0_20], %67 {strides = array<i32>} : memref<72x512xf32, #tpu.memory_space<vmem>>, vector<8x512xf32>,
    %c495_i32 = arith.constant 495 : i32
    %69 = tpu.dynamic_rotate %22 by %c495_i32 dim 1 : vector<8x512xf32>, i32 -> vector<8x512xf32>
    %70 = arith.andi %8, %12 : vector<1x512xi1>
    %cst_21 = arith.constant 0.000000e+00 : f32
    %71 = vector.shape_cast %70 : vector<1x512xi1> to vector<1x512xi1>
    %72 = vector.broadcast %71 : vector<1x512xi1> to vector<8x512xi1>
    %73 = vector.broadcast %cst_21 : f32 to vector<8x512xf32>
    %74 = arith.select %72, %69, %73 : vector<8x512xi1>, vector<8x512xf32>
    %c64 = arith.constant 64 : index
    %c0_22 = arith.constant 0 : index
    %75 = vector.load %arg7[%c64, %c0_22] : memref<72x512xf32, #tpu.memory_space<vmem>>, vector<8x512xf32>
    tpu.vector_store %arg7[%c64, %c0_22], %74 {strides = array<i32>} : memref<72x512xf32, #tpu.memory_space<vmem>>, vector<8x512xf32>,
    %c0_23 = arith.constant 0 : index
    %c0_24 = arith.constant 0 : index
    %76 = vector.load %arg2[%c0_23, %c0_24] : memref<8x72xf32, #tpu.memory_space<vmem>>, vector<8x72xf32>
    %c0_25 = arith.constant 0 : index
    %c0_26 = arith.constant 0 : index
    %77 = vector.load %arg7[%c0_25, %c0_26] : memref<72x512xf32, #tpu.memory_space<vmem>>, vector<72x512xf32>
    %cst_27 = arith.constant dense<0.000000e+00> : vector<8x512xf32>
    %78 = tpu.matmul %76, %77, %cst_27 {dimension_numbers = #tpu.dot_dimension_numbers<[1], [0], [0], [1], [0, 0, 1, 1], [], []>} : vector<8x72xf32>, vector<72x512xf32>, vector<8x512xf32> -> vector<8x512xf32>
    %c0_28 = arith.constant 0 : index
    %c0_29 = arith.constant 0 : index
    %79 = vector.load %arg3[%c0_28, %c0_29] : memref<8x1xf32, #tpu.memory_space<vmem>>, vector<8x1xf32>
    %80 = vector.broadcast %79 : vector<8x1xf32> to vector<8x512xf32>
    %81 = arith.addf %78, %80 : vector<8x512xf32>
    %cst_30 = arith.constant 0.000000e+00 : f32
    %82 = vector.broadcast %cst_30 : f32 to vector<8x512xf32>
    %83 = arith.maximumf %81, %82 : vector<8x512xf32>
    %84 = arith.addf %83, %22 : vector<8x512xf32>
    %cst_31 = arith.constant 0.000000e+00 : f32
    %85 = vector.broadcast %cst_31 : f32 to vector<8x512xf32>
    %86 = arith.maximumf %84, %85 : vector<8x512xf32>
    %c34_i32 = arith.constant 34 : i32
    %87 = tpu.dynamic_rotate %86 by %c34_i32 dim 1 : vector<8x512xf32>, i32 -> vector<8x512xf32>
    %88 = arith.andi %14, %18 : vector<1x512xi1>
    %cst_32 = arith.constant 0.000000e+00 : f32
    %89 = vector.shape_cast %88 : vector<1x512xi1> to vector<1x512xi1>
    %90 = vector.broadcast %89 : vector<1x512xi1> to vector<8x512xi1>
    %91 = vector.broadcast %cst_32 : f32 to vector<8x512xf32>
    %92 = arith.select %90, %87, %91 : vector<8x512xi1>, vector<8x512xf32>
    %c0_33 = arith.constant 0 : index
    %c0_34 = arith.constant 0 : index
    %93 = vector.load %arg8[%c0_33, %c0_34] : memref<200x512xf32, #tpu.memory_space<vmem>>, vector<8x512xf32>
    tpu.vector_store %arg8[%c0_33, %c0_34], %92 {strides = array<i32>} : memref<200x512xf32, #tpu.memory_space<vmem>>, vector<8x512xf32>,
    %c33_i32 = arith.constant 33 : i32
    %94 = tpu.dynamic_rotate %86 by %c33_i32 dim 1 : vector<8x512xf32>, i32 -> vector<8x512xf32>
    %95 = arith.andi %14, %10 : vector<1x512xi1>
    %cst_35 = arith.constant 0.000000e+00 : f32
    %96 = vector.shape_cast %95 : vector<1x512xi1> to vector<1x512xi1>
    %97 = vector.broadcast %96 : vector<1x512xi1> to vector<8x512xi1>
    %98 = vector.broadcast %cst_35 : f32 to vector<8x512xf32>
    %99 = arith.select %97, %94, %98 : vector<8x512xi1>, vector<8x512xf32>
    %c8_36 = arith.constant 8 : index
    %c0_37 = arith.constant 0 : index
    %100 = vector.load %arg8[%c8_36, %c0_37] : memref<200x512xf32, #tpu.memory_space<vmem>>, vector<8x512xf32>
    tpu.vector_store %arg8[%c8_36, %c0_37], %99 {strides = array<i32>} : memref<200x512xf32, #tpu.memory_space<vmem>>, vector<8x512xf32>,
    %c32_i32_38 = arith.constant 32 : i32
    %101 = tpu.dynamic_rotate %86 by %c32_i32_38 dim 1 : vector<8x512xf32>, i32 -> vector<8x512xf32>
    %cst_39 = arith.constant 0.000000e+00 : f32
    %102 = vector.shape_cast %14 : vector<1x512xi1> to vector<1x512xi1>
    %103 = vector.broadcast %102 : vector<1x512xi1> to vector<8x512xi1>
    %104 = vector.broadcast %cst_39 : f32 to vector<8x512xf32>
    %105 = arith.select %103, %101, %104 : vector<8x512xi1>, vector<8x512xf32>
    %c16_40 = arith.constant 16 : index
    %c0_41 = arith.constant 0 : index
    %106 = vector.load %arg8[%c16_40, %c0_41] : memref<200x512xf32, #tpu.memory_space<vmem>>, vector<8x512xf32>
    tpu.vector_store %arg8[%c16_40, %c0_41], %105 {strides = array<i32>} : memref<200x512xf32, #tpu.memory_space<vmem>>, vector<8x512xf32>,
    %c31_i32 = arith.constant 31 : i32
    %107 = tpu.dynamic_rotate %86 by %c31_i32 dim 1 : vector<8x512xf32>, i32 -> vector<8x512xf32>
    %108 = arith.andi %14, %12 : vector<1x512xi1>
    %cst_42 = arith.constant 0.000000e+00 : f32
    %109 = vector.shape_cast %108 : vector<1x512xi1> to vector<1x512xi1>
    %110 = vector.broadcast %109 : vector<1x512xi1> to vector<8x512xi1>
    %111 = vector.broadcast %cst_42 : f32 to vector<8x512xf32>
    %112 = arith.select %110, %107, %111 : vector<8x512xi1>, vector<8x512xf32>
    %c24_43 = arith.constant 24 : index
    %c0_44 = arith.constant 0 : index
    %113 = vector.load %arg8[%c24_43, %c0_44] : memref<200x512xf32, #tpu.memory_space<vmem>>, vector<8x512xf32>
    tpu.vector_store %arg8[%c24_43, %c0_44], %112 {strides = array<i32>} : memref<200x512xf32, #tpu.memory_space<vmem>>, vector<8x512xf32>,
    %c30_i32 = arith.constant 30 : i32
    %114 = tpu.dynamic_rotate %86 by %c30_i32 dim 1 : vector<8x512xf32>, i32 -> vector<8x512xf32>
    %115 = arith.andi %14, %20 : vector<1x512xi1>
    %cst_45 = arith.constant 0.000000e+00 : f32
    %116 = vector.shape_cast %115 : vector<1x512xi1> to vector<1x512xi1>
    %117 = vector.broadcast %116 : vector<1x512xi1> to vector<8x512xi1>
    %118 = vector.broadcast %cst_45 : f32 to vector<8x512xf32>
    %119 = arith.select %117, %114, %118 : vector<8x512xi1>, vector<8x512xf32>
    %c32_46 = arith.constant 32 : index
    %c0_47 = arith.constant 0 : index
    %120 = vector.load %arg8[%c32_46, %c0_47] : memref<200x512xf32, #tpu.memory_space<vmem>>, vector<8x512xf32>
    tpu.vector_store %arg8[%c32_46, %c0_47], %119 {strides = array<i32>} : memref<200x512xf32, #tpu.memory_space<vmem>>, vector<8x512xf32>,
    %c18_i32 = arith.constant 18 : i32
    %121 = tpu.dynamic_rotate %86 by %c18_i32 dim 1 : vector<8x512xf32>, i32 -> vector<8x512xf32>
    %122 = arith.andi %6, %18 : vector<1x512xi1>
    %cst_48 = arith.constant 0.000000e+00 : f32
    %123 = vector.shape_cast %122 : vector<1x512xi1> to vector<1x512xi1>
    %124 = vector.broadcast %123 : vector<1x512xi1> to vector<8x512xi1>
    %125 = vector.broadcast %cst_48 : f32 to vector<8x512xf32>
    %126 = arith.select %124, %121, %125 : vector<8x512xi1>, vector<8x512xf32>
    %c40_49 = arith.constant 40 : index
    %c0_50 = arith.constant 0 : index
    %127 = vector.load %arg8[%c40_49, %c0_50] : memref<200x512xf32, #tpu.memory_space<vmem>>, vector<8x512xf32>
    tpu.vector_store %arg8[%c40_49, %c0_50], %126 {strides = array<i32>} : memref<200x512xf32, #tpu.memory_space<vmem>>, vector<8x512xf32>,
    %c17_i32_51 = arith.constant 17 : i32
    %128 = tpu.dynamic_rotate %86 by %c17_i32_51 dim 1 : vector<8x512xf32>, i32 -> vector<8x512xf32>
    %129 = arith.andi %6, %10 : vector<1x512xi1>
    %cst_52 = arith.constant 0.000000e+00 : f32
    %130 = vector.shape_cast %129 : vector<1x512xi1> to vector<1x512xi1>
    %131 = vector.broadcast %130 : vector<1x512xi1> to vector<8x512xi1>
    %132 = vector.broadcast %cst_52 : f32 to vector<8x512xf32>
    %133 = arith.select %131, %128, %132 : vector<8x512xi1>, vector<8x512xf32>
    %c48_53 = arith.constant 48 : index
    %c0_54 = arith.constant 0 : index
    %134 = vector.load %arg8[%c48_53, %c0_54] : memref<200x512xf32, #tpu.memory_space<vmem>>, vector<8x512xf32>
    tpu.vector_store %arg8[%c48_53, %c0_54], %133 {strides = array<i32>} : memref<200x512xf32, #tpu.memory_space<vmem>>, vector<8x512xf32>,
    %c16_i32_55 = arith.constant 16 : i32
    %135 = tpu.dynamic_rotate %86 by %c16_i32_55 dim 1 : vector<8x512xf32>, i32 -> vector<8x512xf32>
    %cst_56 = arith.constant 0.000000e+00 : f32
    %136 = vector.shape_cast %6 : vector<1x512xi1> to vector<1x512xi1>
    %137 = vector.broadcast %136 : vector<1x512xi1> to vector<8x512xi1>
    %138 = vector.broadcast %cst_56 : f32 to vector<8x512xf32>
    %139 = arith.select %137, %135, %138 : vector<8x512xi1>, vector<8x512xf32>
    %c56_57 = arith.constant 56 : index
    %c0_58 = arith.constant 0 : index
    %140 = vector.load %arg8[%c56_57, %c0_58] : memref<200x512xf32, #tpu.memory_space<vmem>>, vector<8x512xf32>
    tpu.vector_store %arg8[%c56_57, %c0_58], %139 {strides = array<i32>} : memref<200x512xf32, #tpu.memory_space<vmem>>, vector<8x512xf32>,
    %c15_i32_59 = arith.constant 15 : i32
    %141 = tpu.dynamic_rotate %86 by %c15_i32_59 dim 1 : vector<8x512xf32>, i32 -> vector<8x512xf32>
    %142 = arith.andi %6, %12 : vector<1x512xi1>
    %cst_60 = arith.constant 0.000000e+00 : f32
    %143 = vector.shape_cast %142 : vector<1x512xi1> to vector<1x512xi1>
    %144 = vector.broadcast %143 : vector<1x512xi1> to vector<8x512xi1>
    %145 = vector.broadcast %cst_60 : f32 to vector<8x512xf32>
    %146 = arith.select %144, %141, %145 : vector<8x512xi1>, vector<8x512xf32>
    %c64_61 = arith.constant 64 : index
    %c0_62 = arith.constant 0 : index
    %147 = vector.load %arg8[%c64_61, %c0_62] : memref<200x512xf32, #tpu.memory_space<vmem>>, vector<8x512xf32>
    tpu.vector_store %arg8[%c64_61, %c0_62], %146 {strides = array<i32>} : memref<200x512xf32, #tpu.memory_space<vmem>>, vector<8x512xf32>,
    %c14_i32_63 = arith.constant 14 : i32
    %148 = tpu.dynamic_rotate %86 by %c14_i32_63 dim 1 : vector<8x512xf32>, i32 -> vector<8x512xf32>
    %149 = arith.andi %6, %20 : vector<1x512xi1>
    %cst_64 = arith.constant 0.000000e+00 : f32
    %150 = vector.shape_cast %149 : vector<1x512xi1> to vector<1x512xi1>
    %151 = vector.broadcast %150 : vector<1x512xi1> to vector<8x512xi1>
    %152 = vector.broadcast %cst_64 : f32 to vector<8x512xf32>
    %153 = arith.select %151, %148, %152 : vector<8x512xi1>, vector<8x512xf32>
    %c72 = arith.constant 72 : index
    %c0_65 = arith.constant 0 : index
    %154 = vector.load %arg8[%c72, %c0_65] : memref<200x512xf32, #tpu.memory_space<vmem>>, vector<8x512xf32>
    tpu.vector_store %arg8[%c72, %c0_65], %153 {strides = array<i32>} : memref<200x512xf32, #tpu.memory_space<vmem>>, vector<8x512xf32>,
    %c2_i32_66 = arith.constant 2 : i32
    %155 = tpu.dynamic_rotate %86 by %c2_i32_66 dim 1 : vector<8x512xf32>, i32 -> vector<8x512xf32>
    %cst_67 = arith.constant 0.000000e+00 : f32
    %156 = vector.shape_cast %18 : vector<1x512xi1> to vector<1x512xi1>
    %157 = vector.broadcast %156 : vector<1x512xi1> to vector<8x512xi1>
    %158 = vector.broadcast %cst_67 : f32 to vector<8x512xf32>
    %159 = arith.select %157, %155, %158 : vector<8x512xi1>, vector<8x512xf32>
    %c80 = arith.constant 80 : index
    %c0_68 = arith.constant 0 : index
    %160 = vector.load %arg8[%c80, %c0_68] : memref<200x512xf32, #tpu.memory_space<vmem>>, vector<8x512xf32>
    tpu.vector_store %arg8[%c80, %c0_68], %159 {strides = array<i32>} : memref<200x512xf32, #tpu.memory_space<vmem>>, vector<8x512xf32>,
    %c1_i32_69 = arith.constant 1 : i32
    %161 = tpu.dynamic_rotate %86 by %c1_i32_69 dim 1 : vector<8x512xf32>, i32 -> vector<8x512xf32>
    %cst_70 = arith.constant 0.000000e+00 : f32
    %162 = vector.shape_cast %10 : vector<1x512xi1> to vector<1x512xi1>
    %163 = vector.broadcast %162 : vector<1x512xi1> to vector<8x512xi1>
    %164 = vector.broadcast %cst_70 : f32 to vector<8x512xf32>
    %165 = arith.select %163, %161, %164 : vector<8x512xi1>, vector<8x512xf32>
    %c88 = arith.constant 88 : index
    %c0_71 = arith.constant 0 : index
    %166 = vector.load %arg8[%c88, %c0_71] : memref<200x512xf32, #tpu.memory_space<vmem>>, vector<8x512xf32>
    tpu.vector_store %arg8[%c88, %c0_71], %165 {strides = array<i32>} : memref<200x512xf32, #tpu.memory_space<vmem>>, vector<8x512xf32>,
    %c96 = arith.constant 96 : index
    %c0_72 = arith.constant 0 : index
    %167 = vector.load %arg8[%c96, %c0_72] : memref<200x512xf32, #tpu.memory_space<vmem>>, vector<8x512xf32>
    tpu.vector_store %arg8[%c96, %c0_72], %86 {strides = array<i32>} : memref<200x512xf32, #tpu.memory_space<vmem>>, vector<8x512xf32>,
    %c511_i32_73 = arith.constant 511 : i32
    %168 = tpu.dynamic_rotate %86 by %c511_i32_73 dim 1 : vector<8x512xf32>, i32 -> vector<8x512xf32>
    %cst_74 = arith.constant 0.000000e+00 : f32
    %169 = vector.shape_cast %12 : vector<1x512xi1> to vector<1x512xi1>
    %170 = vector.broadcast %169 : vector<1x512xi1> to vector<8x512xi1>
    %171 = vector.broadcast %cst_74 : f32 to vector<8x512xf32>
    %172 = arith.select %170, %168, %171 : vector<8x512xi1>, vector<8x512xf32>
    %c104 = arith.constant 104 : index
    %c0_75 = arith.constant 0 : index
    %173 = vector.load %arg8[%c104, %c0_75] : memref<200x512xf32, #tpu.memory_space<vmem>>, vector<8x512xf32>
    tpu.vector_store %arg8[%c104, %c0_75], %172 {strides = array<i32>} : memref<200x512xf32, #tpu.memory_space<vmem>>, vector<8x512xf32>,
    %c510_i32 = arith.constant 510 : i32
    %174 = tpu.dynamic_rotate %86 by %c510_i32 dim 1 : vector<8x512xf32>, i32 -> vector<8x512xf32>
    %cst_76 = arith.constant 0.000000e+00 : f32
    %175 = vector.shape_cast %20 : vector<1x512xi1> to vector<1x512xi1>
    %176 = vector.broadcast %175 : vector<1x512xi1> to vector<8x512xi1>
    %177 = vector.broadcast %cst_76 : f32 to vector<8x512xf32>
    %178 = arith.select %176, %174, %177 : vector<8x512xi1>, vector<8x512xf32>
    %c112 = arith.constant 112 : index
    %c0_77 = arith.constant 0 : index
    %179 = vector.load %arg8[%c112, %c0_77] : memref<200x512xf32, #tpu.memory_space<vmem>>, vector<8x512xf32>
    tpu.vector_store %arg8[%c112, %c0_77], %178 {strides = array<i32>} : memref<200x512xf32, #tpu.memory_space<vmem>>, vector<8x512xf32>,
    %c498_i32 = arith.constant 498 : i32
    %180 = tpu.dynamic_rotate %86 by %c498_i32 dim 1 : vector<8x512xf32>, i32 -> vector<8x512xf32>
    %181 = arith.andi %8, %18 : vector<1x512xi1>
    %cst_78 = arith.constant 0.000000e+00 : f32
    %182 = vector.shape_cast %181 : vector<1x512xi1> to vector<1x512xi1>
    %183 = vector.broadcast %182 : vector<1x512xi1> to vector<8x512xi1>
    %184 = vector.broadcast %cst_78 : f32 to vector<8x512xf32>
    %185 = arith.select %183, %180, %184 : vector<8x512xi1>, vector<8x512xf32>
    %c120 = arith.constant 120 : index
    %c0_79 = arith.constant 0 : index
    %186 = vector.load %arg8[%c120, %c0_79] : memref<200x512xf32, #tpu.memory_space<vmem>>, vector<8x512xf32>
    tpu.vector_store %arg8[%c120, %c0_79], %185 {strides = array<i32>} : memref<200x512xf32, #tpu.memory_space<vmem>>, vector<8x512xf32>,
    %c497_i32_80 = arith.constant 497 : i32
    %187 = tpu.dynamic_rotate %86 by %c497_i32_80 dim 1 : vector<8x512xf32>, i32 -> vector<8x512xf32>
    %188 = arith.andi %8, %10 : vector<1x512xi1>
    %cst_81 = arith.constant 0.000000e+00 : f32
    %189 = vector.shape_cast %188 : vector<1x512xi1> to vector<1x512xi1>
    %190 = vector.broadcast %189 : vector<1x512xi1> to vector<8x512xi1>
    %191 = vector.broadcast %cst_81 : f32 to vector<8x512xf32>
    %192 = arith.select %190, %187, %191 : vector<8x512xi1>, vector<8x512xf32>
    %c128 = arith.constant 128 : index
    %c0_82 = arith.constant 0 : index
    %193 = vector.load %arg8[%c128, %c0_82] : memref<200x512xf32, #tpu.memory_space<vmem>>, vector<8x512xf32>
    tpu.vector_store %arg8[%c128, %c0_82], %192 {strides = array<i32>} : memref<200x512xf32, #tpu.memory_space<vmem>>, vector<8x512xf32>,
    %c496_i32_83 = arith.constant 496 : i32
    %194 = tpu.dynamic_rotate %86 by %c496_i32_83 dim 1 : vector<8x512xf32>, i32 -> vector<8x512xf32>
    %cst_84 = arith.constant 0.000000e+00 : f32
    %195 = vector.shape_cast %8 : vector<1x512xi1> to vector<1x512xi1>
    %196 = vector.broadcast %195 : vector<1x512xi1> to vector<8x512xi1>
    %197 = vector.broadcast %cst_84 : f32 to vector<8x512xf32>
    %198 = arith.select %196, %194, %197 : vector<8x512xi1>, vector<8x512xf32>
    %c136 = arith.constant 136 : index
    %c0_85 = arith.constant 0 : index
    %199 = vector.load %arg8[%c136, %c0_85] : memref<200x512xf32, #tpu.memory_space<vmem>>, vector<8x512xf32>
    tpu.vector_store %arg8[%c136, %c0_85], %198 {strides = array<i32>} : memref<200x512xf32, #tpu.memory_space<vmem>>, vector<8x512xf32>,
    %c495_i32_86 = arith.constant 495 : i32
    %200 = tpu.dynamic_rotate %86 by %c495_i32_86 dim 1 : vector<8x512xf32>, i32 -> vector<8x512xf32>
    %201 = arith.andi %8, %12 : vector<1x512xi1>
    %cst_87 = arith.constant 0.000000e+00 : f32
    %202 = vector.shape_cast %201 : vector<1x512xi1> to vector<1x512xi1>
    %203 = vector.broadcast %202 : vector<1x512xi1> to vector<8x512xi1>
    %204 = vector.broadcast %cst_87 : f32 to vector<8x512xf32>
    %205 = arith.select %203, %200, %204 : vector<8x512xi1>, vector<8x512xf32>
    %c144 = arith.constant 144 : index
    %c0_88 = arith.constant 0 : index
    %206 = vector.load %arg8[%c144, %c0_88] : memref<200x512xf32, #tpu.memory_space<vmem>>, vector<8x512xf32>
    tpu.vector_store %arg8[%c144, %c0_88], %205 {strides = array<i32>} : memref<200x512xf32, #tpu.memory_space<vmem>>, vector<8x512xf32>,
    %c494_i32 = arith.constant 494 : i32
    %207 = tpu.dynamic_rotate %86 by %c494_i32 dim 1 : vector<8x512xf32>, i32 -> vector<8x512xf32>
    %208 = arith.andi %8, %20 : vector<1x512xi1>
    %cst_89 = arith.constant 0.000000e+00 : f32
    %209 = vector.shape_cast %208 : vector<1x512xi1> to vector<1x512xi1>
    %210 = vector.broadcast %209 : vector<1x512xi1> to vector<8x512xi1>
    %211 = vector.broadcast %cst_89 : f32 to vector<8x512xf32>
    %212 = arith.select %210, %207, %211 : vector<8x512xi1>, vector<8x512xf32>
    %c152 = arith.constant 152 : index
    %c0_90 = arith.constant 0 : index
    %213 = vector.load %arg8[%c152, %c0_90] : memref<200x512xf32, #tpu.memory_space<vmem>>, vector<8x512xf32>
    tpu.vector_store %arg8[%c152, %c0_90], %212 {strides = array<i32>} : memref<200x512xf32, #tpu.memory_space<vmem>>, vector<8x512xf32>,
    %c482_i32 = arith.constant 482 : i32
    %214 = tpu.dynamic_rotate %86 by %c482_i32 dim 1 : vector<8x512xf32>, i32 -> vector<8x512xf32>
    %215 = arith.andi %16, %18 : vector<1x512xi1>
    %cst_91 = arith.constant 0.000000e+00 : f32
    %216 = vector.shape_cast %215 : vector<1x512xi1> to vector<1x512xi1>
    %217 = vector.broadcast %216 : vector<1x512xi1> to vector<8x512xi1>
    %218 = vector.broadcast %cst_91 : f32 to vector<8x512xf32>
    %219 = arith.select %217, %214, %218 : vector<8x512xi1>, vector<8x512xf32>
    %c160 = arith.constant 160 : index
    %c0_92 = arith.constant 0 : index
    %220 = vector.load %arg8[%c160, %c0_92] : memref<200x512xf32, #tpu.memory_space<vmem>>, vector<8x512xf32>
    tpu.vector_store %arg8[%c160, %c0_92], %219 {strides = array<i32>} : memref<200x512xf32, #tpu.memory_space<vmem>>, vector<8x512xf32>,
    %c481_i32 = arith.constant 481 : i32
    %221 = tpu.dynamic_rotate %86 by %c481_i32 dim 1 : vector<8x512xf32>, i32 -> vector<8x512xf32>
    %222 = arith.andi %16, %10 : vector<1x512xi1>
    %cst_93 = arith.constant 0.000000e+00 : f32
    %223 = vector.shape_cast %222 : vector<1x512xi1> to vector<1x512xi1>
    %224 = vector.broadcast %223 : vector<1x512xi1> to vector<8x512xi1>
    %225 = vector.broadcast %cst_93 : f32 to vector<8x512xf32>
    %226 = arith.select %224, %221, %225 : vector<8x512xi1>, vector<8x512xf32>
    %c168 = arith.constant 168 : index
    %c0_94 = arith.constant 0 : index
    %227 = vector.load %arg8[%c168, %c0_94] : memref<200x512xf32, #tpu.memory_space<vmem>>, vector<8x512xf32>
    tpu.vector_store %arg8[%c168, %c0_94], %226 {strides = array<i32>} : memref<200x512xf32, #tpu.memory_space<vmem>>, vector<8x512xf32>,
    %c480_i32 = arith.constant 480 : i32
    %228 = tpu.dynamic_rotate %86 by %c480_i32 dim 1 : vector<8x512xf32>, i32 -> vector<8x512xf32>
    %cst_95 = arith.constant 0.000000e+00 : f32
    %229 = vector.shape_cast %16 : vector<1x512xi1> to vector<1x512xi1>
    %230 = vector.broadcast %229 : vector<1x512xi1> to vector<8x512xi1>
    %231 = vector.broadcast %cst_95 : f32 to vector<8x512xf32>
    %232 = arith.select %230, %228, %231 : vector<8x512xi1>, vector<8x512xf32>
    %c176 = arith.constant 176 : index
    %c0_96 = arith.constant 0 : index
    %233 = vector.load %arg8[%c176, %c0_96] : memref<200x512xf32, #tpu.memory_space<vmem>>, vector<8x512xf32>
    tpu.vector_store %arg8[%c176, %c0_96], %232 {strides = array<i32>} : memref<200x512xf32, #tpu.memory_space<vmem>>, vector<8x512xf32>,
    %c479_i32 = arith.constant 479 : i32
    %234 = tpu.dynamic_rotate %86 by %c479_i32 dim 1 : vector<8x512xf32>, i32 -> vector<8x512xf32>
    %235 = arith.andi %16, %12 : vector<1x512xi1>
    %cst_97 = arith.constant 0.000000e+00 : f32
    %236 = vector.shape_cast %235 : vector<1x512xi1> to vector<1x512xi1>
    %237 = vector.broadcast %236 : vector<1x512xi1> to vector<8x512xi1>
    %238 = vector.broadcast %cst_97 : f32 to vector<8x512xf32>
    %239 = arith.select %237, %234, %238 : vector<8x512xi1>, vector<8x512xf32>
    %c184 = arith.constant 184 : index
    %c0_98 = arith.constant 0 : index
    %240 = vector.load %arg8[%c184, %c0_98] : memref<200x512xf32, #tpu.memory_space<vmem>>, vector<8x512xf32>
    tpu.vector_store %arg8[%c184, %c0_98], %239 {strides = array<i32>} : memref<200x512xf32, #tpu.memory_space<vmem>>, vector<8x512xf32>,
    %c478_i32 = arith.constant 478 : i32
    %241 = tpu.dynamic_rotate %86 by %c478_i32 dim 1 : vector<8x512xf32>, i32 -> vector<8x512xf32>
    %242 = arith.andi %16, %20 : vector<1x512xi1>
    %cst_99 = arith.constant 0.000000e+00 : f32
    %243 = vector.shape_cast %242 : vector<1x512xi1> to vector<1x512xi1>
    %244 = vector.broadcast %243 : vector<1x512xi1> to vector<8x512xi1>
    %245 = vector.broadcast %cst_99 : f32 to vector<8x512xf32>
    %246 = arith.select %244, %241, %245 : vector<8x512xi1>, vector<8x512xf32>
    %c192 = arith.constant 192 : index
    %c0_100 = arith.constant 0 : index
    %247 = vector.load %arg8[%c192, %c0_100] : memref<200x512xf32, #tpu.memory_space<vmem>>, vector<8x512xf32>
    tpu.vector_store %arg8[%c192, %c0_100], %246 {strides = array<i32>} : memref<200x512xf32, #tpu.memory_space<vmem>>, vector<8x512xf32>,
    %c0_101 = arith.constant 0 : index
    %c0_102 = arith.constant 0 : index
    %248 = vector.load %arg4[%c0_101, %c0_102] : memref<8x200xf32, #tpu.memory_space<vmem>>, vector<8x200xf32>
    %c0_103 = arith.constant 0 : index
    %c0_104 = arith.constant 0 : index
    %249 = vector.load %arg8[%c0_103, %c0_104] : memref<200x512xf32, #tpu.memory_space<vmem>>, vector<200x512xf32>
    %cst_105 = arith.constant dense<0.000000e+00> : vector<8x512xf32>
    %250 = tpu.matmul %248, %249, %cst_105 {dimension_numbers = #tpu.dot_dimension_numbers<[1], [0], [0], [1], [0, 0, 1, 1], [], []>} : vector<8x200xf32>, vector<200x512xf32>, vector<8x512xf32> -> vector<8x512xf32>
    %c0_106 = arith.constant 0 : index
    %c0_107 = arith.constant 0 : index
    %251 = vector.load %arg5[%c0_106, %c0_107] : memref<8x1xf32, #tpu.memory_space<vmem>>, vector<8x1xf32>
    %252 = vector.broadcast %251 : vector<8x1xf32> to vector<8x512xf32>
    %253 = arith.addf %250, %252 : vector<8x512xf32>
    %cst_108 = arith.constant 0.000000e+00 : f32
    %254 = vector.broadcast %cst_108 : f32 to vector<8x512xf32>
    %255 = arith.maximumf %253, %254 : vector<8x512xf32>
    %256 = arith.addf %255, %86 : vector<8x512xf32>
    %cst_109 = arith.constant 0.000000e+00 : f32
    %257 = vector.broadcast %cst_109 : f32 to vector<8x512xf32>
    %258 = arith.maximumf %256, %257 : vector<8x512xf32>
    %c0_110 = arith.constant 0 : index
    %c0_111 = arith.constant 0 : index
    %c0_112 = arith.constant 0 : index
    %259 = vector.load %arg6[%c0_110, %c0_111, %c0_112] : memref<1x8x512xf32, #tpu.memory_space<vmem>>, vector<1x8x512xf32>
    %260 = vector.shape_cast %259 : vector<1x8x512xf32> to vector<8x512xf32>
    %261 = vector.shape_cast %258 : vector<8x512xf32> to vector<1x8x512xf32>
    tpu.vector_store %arg6[%c0_110, %c0_111, %c0_112], %261 {strides = array<i32>} : memref<1x8x512xf32, #tpu.memory_space<vmem>>, vector<1x8x512xf32>,
    return
  }
  func.func @transform_0(%arg0: i32) -> (i32, i32, i32) {
    %c0_i32 = arith.constant 0 : i32
    %c0_i32_0 = arith.constant 0 : i32
    %c0_i32_1 = arith.constant 0 : i32
    return %arg0, %c0_i32, %c0_i32_0 : i32, i32, i32
  }
  func.func @transform_1(%arg0: i32) -> (i32, i32) {
    %c0_i32 = arith.constant 0 : i32
    %c0_i32_0 = arith.constant 0 : i32
    %c0_i32_1 = arith.constant 0 : i32
    return %c0_i32, %c0_i32_0 : i32, i32
  }
  func.func @transform_2(%arg0: i32) -> (i32, i32) {
    %c0_i32 = arith.constant 0 : i32
    %c0_i32_0 = arith.constant 0 : i32
    %c0_i32_1 = arith.constant 0 : i32
    return %c0_i32, %c0_i32_0 : i32, i32
  }
  func.func @transform_3(%arg0: i32) -> (i32, i32) {
    %c0_i32 = arith.constant 0 : i32
    %c0_i32_0 = arith.constant 0 : i32
    %c0_i32_1 = arith.constant 0 : i32
    return %c0_i32, %c0_i32_0 : i32, i32
  }
  func.func @transform_4(%arg0: i32) -> (i32, i32) {
    %c0_i32 = arith.constant 0 : i32
    %c0_i32_0 = arith.constant 0 : i32
    %c0_i32_1 = arith.constant 0 : i32
    return %c0_i32, %c0_i32_0 : i32, i32
  }
  func.func @transform_5(%arg0: i32) -> (i32, i32, i32) {
    %c0_i32 = arith.constant 0 : i32
    %c0_i32_0 = arith.constant 0 : i32
    %c0_i32_1 = arith.constant 0 : i32
    return %arg0, %c0_i32, %c0_i32_0 : i32, i32, i32
  }
}

</mosaic_0001>

<llo_original>
// kernel: mkrb_forward.1
$region0: #{mkrb_forward.1}
  #allocation0 [shape = 'u32[]', space=smem, size = 0x4, offset = 0x4, fixed_abs, tag = 'smem constant byte address 0x4 - core index']
  #allocation1 [shape = 'u32[144,128]{1,0:T(1,128)}', space=vmem, size = 0x12000, scoped, tag = 'internal scratch']
  #allocation2 [shape = 'f32[72,512]{1,0:T(8,128)}', space=vmem, size = 0x24000, scoped, tag = 'scratch operand']
  #allocation3 [shape = 'f32[200,512]{1,0:T(8,128)}', space=vmem, size = 0x64000, scoped, tag = 'scratch operand']
  %s0 = inlined_call_operand.vmem [shape: f32[1,8,512], index: 0, kind: input, shape index: {}]
  %s1 = inlined_call_operand.vmem [shape: f32[8,72], index: 1, kind: input, shape index: {}]
  %s2 = inlined_call_operand.vmem [shape: f32[8,1], index: 2, kind: input, shape index: {}]
  %s3 = inlined_call_operand.vmem [shape: f32[8,200], index: 3, kind: input, shape index: {}]
  %s4 = inlined_call_operand.vmem [shape: f32[8,1], index: 4, kind: input, shape index: {}]
  %s5 = inlined_call_operand.vmem [shape: f32[1,8,512], index: 5, kind: output, shape index: {}]
  %s6 = sld [smem:[#allocation0]]
  $region30: #{mkrb_forward.1} parent=0
    _
  %s8 = ssub.s32 1, %s6
  %s9 = scalar_select 0, %s8, %s6
  // Predicated region
  $region2: #{mkrb_forward.1} parent=0 // pred_check
    _
  $region3: #{mkrb_forward.1} parent=0 // pred_check_branch
    %11 = sbr.rel (0) target = $region5
  $region4: #{mkrb_forward.1} parent=0 // pred_region
    _
  $region5: #{mkrb_forward.1} parent=0 // pred_fallthru
    _
  // Predicated region
  $region6: #{mkrb_forward.1} parent=0 // pred_check
    _
  $region7: #{mkrb_forward.1} parent=0 // pred_check_branch
    %13 = sbr.rel (0) target = $region9
  $region8: #{mkrb_forward.1} parent=0 // pred_region
    _
  $region9: #{mkrb_forward.1} parent=0 // pred_fallthru
    _
  // Predicated region
  $region10: #{mkrb_forward.1} parent=0 // pred_check
    _
  $region11: #{mkrb_forward.1} parent=0 // pred_check_branch
    %15 = sbr.rel (0) target = $region13
  $region12: #{mkrb_forward.1} parent=0 // pred_region
    _
  $region13: #{mkrb_forward.1} parent=0 // pred_fallthru
    _
  // Predicated region
  $region14: #{mkrb_forward.1} parent=0 // pred_check
    _
  $region15: #{mkrb_forward.1} parent=0 // pred_check_branch
    %17 = sbr.rel (0) target = $region17
  $region16: #{mkrb_forward.1} parent=0 // pred_region
    _
  $region17: #{mkrb_forward.1} parent=0 // pred_fallthru
    _
  // Predicated region
  $region18: #{mkrb_forward.1} parent=0 // pred_check
    _
  $region19: #{mkrb_forward.1} parent=0 // pred_check_branch
    %19 = sbr.rel (0) target = $region21
  $region20: #{mkrb_forward.1} parent=0 // pred_region
    _
  $region21: #{mkrb_forward.1} parent=0 // pred_fallthru
    _
  %v20 = vlaneseq
  %v21 = vand.u32 %v20, 127
  %v22 = vadd.s32 %v21, 128
  %v23 = vadd.s32 %v21, 256
  %v24 = vadd.s32 %v21, 384
  %v25 = vand.u32 %v21, 255
  %v26 = vand.u32 %v22, 255
  %v27 = vand.u32 %v23, 255
  %v28 = vand.u32 %v24, 255
  %v29 = vand.u32 %v25, 15
  %v30 = vand.u32 %v26, 15
  %v31 = vand.u32 %v27, 15
  %v32 = vand.u32 %v28, 15
  %vm33 = vcmp.ge.s32.totalorder %v25, 16
  %vm34 = vcmp.ge.s32.totalorder %v26, 16
  %vm35 = vcmp.ge.s32.totalorder %v27, 16
  %vm36 = vcmp.ge.s32.totalorder %v28, 16
  %vm37 = vcmp.lt.s32.totalorder %v25, 240
  %vm38 = vcmp.lt.s32.totalorder %v26, 240
  %vm39 = vcmp.lt.s32.totalorder %v27, 240
  %vm40 = vcmp.lt.s32.totalorder %v28, 240
  %vm41 = vcmp.ge.s32.totalorder %v29, 1
  %vm42 = vcmp.ge.s32.totalorder %v30, 1
  %vm43 = vcmp.ge.s32.totalorder %v31, 1
  %vm44 = vcmp.ge.s32.totalorder %v32, 1
  %vm45 = vcmp.lt.s32.totalorder %v29, 15
  %vm46 = vcmp.lt.s32.totalorder %v30, 15
  %vm47 = vcmp.lt.s32.totalorder %v31, 15
  %vm48 = vcmp.lt.s32.totalorder %v32, 15
  %vm49 = vcmp.ge.s32.totalorder %v25, 32
  %vm50 = vcmp.ge.s32.totalorder %v26, 32
  %vm51 = vcmp.ge.s32.totalorder %v27, 32
  %vm52 = vcmp.ge.s32.totalorder %v28, 32
  %vm53 = vcmp.lt.s32.totalorder %v25, 224
  %vm54 = vcmp.lt.s32.totalorder %v26, 224
  %vm55 = vcmp.lt.s32.totalorder %v27, 224
  %vm56 = vcmp.lt.s32.totalorder %v28, 224
  %vm57 = vcmp.ge.s32.totalorder %v29, 2
  %vm58 = vcmp.ge.s32.totalorder %v30, 2
  %vm59 = vcmp.ge.s32.totalorder %v31, 2
  %vm60 = vcmp.ge.s32.totalorder %v32, 2
  %vm61 = vcmp.lt.s32.totalorder %v29, 14
  %vm62 = vcmp.lt.s32.totalorder %v30, 14
  %vm63 = vcmp.lt.s32.totalorder %v31, 14
  %vm64 = vcmp.lt.s32.totalorder %v32, 14
  %v65 = vld [vmem:[%s0] sm:$0xff]
  %v66 = vld [vmem:[%s0 + $0x8] sm:$0xff]
  %v67 = vld [vmem:[%s0 + $0x10] sm:$0xff]
  %v68 = vld [vmem:[%s0 + $0x18] sm:$0xff]
  %69 = vrot.lane.b32.xlu0 %v65, 17
  %v70 = vpop.permute.xlu0 %69
  %71 = vrot.lane.b32.xlu0 %v66, 17
  %v72 = vpop.permute.xlu0 %71
  %73 = vrot.lane.b32.xlu0 %v67, 17
  %v74 = vpop.permute.xlu0 %73
  %75 = vrot.lane.b32.xlu0 %v68, 17
  %v76 = vpop.permute.xlu0 %75
  %vm77 = vcmp.lt.s32.totalorder %v21, 17
  %v78 = vsel %vm77, %v74, %v76
  %v79 = vsel %vm77, %v72, %v74
  %v80 = vsel %vm77, %v70, %v72
  %v81 = vsel %vm77, %v76, %v70
  %vm82 = vmand %vm33, %vm41
  %vm83 = vmand %vm34, %vm42
  %vm84 = vmand %vm35, %vm43
  %vm85 = vmand %vm36, %vm44
  %v86 = vsel %vm82, 1, 0
  %v87 = vsel %vm83, 1, 0
  %v88 = vsel %vm84, 1, 0
  %v89 = vsel %vm85, 1, 0
  %vm90 = vcmp.eq.s32.totalorder %v86, 1
  %vm91 = vcmp.eq.s32.totalorder %v87, 1
  %vm92 = vcmp.eq.s32.totalorder %v88, 1
  %vm93 = vcmp.eq.s32.totalorder %v89, 1
  %v94 = vsel %vm90, %v81, 0.0
  %v95 = vsel %vm91, %v80, 0.0
  %v96 = vsel %vm92, %v79, 0.0
  %v97 = vsel %vm93, %v78, 0.0
  %98 = vst [vmem:[#allocation2] sm:$0xff] %v94
  %99 = vst [vmem:[#allocation2 + $0x8] sm:$0xff] %v95
  %100 = vst [vmem:[#allocation2 + $0x10] sm:$0xff] %v96
  %101 = vst [vmem:[#allocation2 + $0x18] sm:$0xff] %v97
  %102 = vrot.lane.b32.xlu0 %v65, 16
  %v103 = vpop.permute.xlu0 %102
  %104 = vrot.lane.b32.xlu0 %v66, 16
  %v105 = vpop.permute.xlu0 %104
  %106 = vrot.lane.b32.xlu0 %v67, 16
  %v107 = vpop.permute.xlu0 %106
  %108 = vrot.lane.b32.xlu0 %v68, 16
  %v109 = vpop.permute.xlu0 %108
  %vm110 = vcmp.lt.s32.totalorder %v21, 16
  %v111 = vsel %vm110, %v107, %v109
  %v112 = vsel %vm110, %v105, %v107
  %v113 = vsel %vm110, %v103, %v105
  %v114 = vsel %vm110, %v109, %v103
  %v115 = vsel %vm33, 1, 0
  %v116 = vsel %vm34, 1, 0
  %v117 = vsel %vm35, 1, 0
  %v118 = vsel %vm36, 1, 0
  %vm119 = vcmp.eq.s32.totalorder %v115, 1
  %vm120 = vcmp.eq.s32.totalorder %v116, 1
  %vm121 = vcmp.eq.s32.totalorder %v117, 1
  %vm122 = vcmp.eq.s32.totalorder %v118, 1
  %v123 = vsel %vm119, %v114, 0.0
  %v124 = vsel %vm120, %v113, 0.0
  %v125 = vsel %vm121, %v112, 0.0
  %v126 = vsel %vm122, %v111, 0.0
  %127 = vst [vmem:[#allocation2 + $0x20] sm:$0xff] %v123
  %128 = vst [vmem:[#allocation2 + $0x28] sm:$0xff] %v124
  %129 = vst [vmem:[#allocation2 + $0x30] sm:$0xff] %v125
  %130 = vst [vmem:[#allocation2 + $0x38] sm:$0xff] %v126
  %131 = vrot.lane.b32.xlu0 %v65, 15
  %v132 = vpop.permute.xlu0 %131
  %133 = vrot.lane.b32.xlu0 %v66, 15
  %v134 = vpop.permute.xlu0 %133
  %135 = vrot.lane.b32.xlu0 %v67, 15
  %v136 = vpop.permute.xlu0 %135
  %137 = vrot.lane.b32.xlu0 %v68, 15
  %v138 = vpop.permute.xlu0 %137
  %vm139 = vcmp.lt.s32.totalorder %v21, 15
  %v140 = vsel %vm139, %v136, %v138
  %v141 = vsel %vm139, %v134, %v136
  %v142 = vsel %vm139, %v132, %v134
  %v143 = vsel %vm139, %v138, %v132
  %vm144 = vmand %vm33, %vm45
  %vm145 = vmand %vm34, %vm46
  %vm146 = vmand %vm35, %vm47
  %vm147 = vmand %vm36, %vm48
  %v148 = vsel %vm144, 1, 0
  %v149 = vsel %vm145, 1, 0
  %v150 = vsel %vm146, 1, 0
  %v151 = vsel %vm147, 1, 0
  %vm152 = vcmp.eq.s32.totalorder %v148, 1
  %vm153 = vcmp.eq.s32.totalorder %v149, 1
  %vm154 = vcmp.eq.s32.totalorder %v150, 1
  %vm155 = vcmp.eq.s32.totalorder %v151, 1
  %v156 = vsel %vm152, %v143, 0.0
  %v157 = vsel %vm153, %v142, 0.0
  %v158 = vsel %vm154, %v141, 0.0
  %v159 = vsel %vm155, %v140, 0.0
  %160 = vst [vmem:[#allocation2 + $0x40] sm:$0xff] %v156
  %161 = vst [vmem:[#allocation2 + $0x48] sm:$0xff] %v157
  %162 = vst [vmem:[#allocation2 + $0x50] sm:$0xff] %v158
  %163 = vst [vmem:[#allocation2 + $0x58] sm:$0xff] %v159
  %164 = vrot.lane.b32.xlu0 %v65, 1
  %v165 = vpop.permute.xlu0 %164
  %166 = vrot.lane.b32.xlu0 %v66, 1
  %v167 = vpop.permute.xlu0 %166
  %168 = vrot.lane.b32.xlu0 %v67, 1
  %v169 = vpop.permute.xlu0 %168
  %170 = vrot.lane.b32.xlu0 %v68, 1
  %v171 = vpop.permute.xlu0 %170
  %vm172 = vcmp.lt.s32.totalorder %v21, 1
  %v173 = vsel %vm172, %v169, %v171
  %v174 = vsel %vm172, %v167, %v169
  %v175 = vsel %vm172, %v165, %v167
  %v176 = vsel %vm172, %v171, %v165
  %v177 = vsel %vm41, 1, 0
  %v178 = vsel %vm42, 1, 0
  %v179 = vsel %vm43, 1, 0
  %v180 = vsel %vm44, 1, 0
  %vm181 = vcmp.eq.s32.totalorder %v177, 1
  %vm182 = vcmp.eq.s32.totalorder %v178, 1
  %vm183 = vcmp.eq.s32.totalorder %v179, 1
  %vm184 = vcmp.eq.s32.totalorder %v180, 1
  %v185 = vsel %vm181, %v176, 0.0
  %v186 = vsel %vm182, %v175, 0.0
  %v187 = vsel %vm183, %v174, 0.0
  %v188 = vsel %vm184, %v173, 0.0
  %189 = vst [vmem:[#allocation2 + $0x60] sm:$0xff] %v185
  %190 = vst [vmem:[#allocation2 + $0x68] sm:$0xff] %v186
  %191 = vst [vmem:[#allocation2 + $0x70] sm:$0xff] %v187
  %192 = vst [vmem:[#allocation2 + $0x78] sm:$0xff] %v188
  %193 = vst [vmem:[#allocation2 + $0x80] sm:$0xff] %v65
  %194 = vst [vmem:[#allocation2 + $0x88] sm:$0xff] %v66
  %195 = vst [vmem:[#allocation2 + $0x90] sm:$0xff] %v67
  %196 = vst [vmem:[#allocation2 + $0x98] sm:$0xff] %v68
  %197 = vrot.lane.b32.xlu0 %v65, 127
  %v198 = vpop.permute.xlu0 %197
  %199 = vrot.lane.b32.xlu0 %v66, 127
  %v200 = vpop.permute.xlu0 %199
  %201 = vrot.lane.b32.xlu0 %v67, 127
  %v202 = vpop.permute.xlu0 %201
  %203 = vrot.lane.b32.xlu0 %v68, 127
  %v204 = vpop.permute.xlu0 %203
  %vm205 = vcmp.lt.s32.totalorder %v21, 127
  %v206 = vsel %vm205, %v202, %v204
  %v207 = vsel %vm205, %v200, %v202
  %v208 = vsel %vm205, %v198, %v200
  %v209 = vsel %vm205, %v204, %v198
  %v210 = vsel %vm45, 1, 0
  %v211 = vsel %vm46, 1, 0
  %v212 = vsel %vm47, 1, 0
  %v213 = vsel %vm48, 1, 0
  %vm214 = vcmp.eq.s32.totalorder %v210, 1
  %vm215 = vcmp.eq.s32.totalorder %v211, 1
  %vm216 = vcmp.eq.s32.totalorder %v212, 1
  %vm217 = vcmp.eq.s32.totalorder %v213, 1
  %v218 = vsel %vm214, %v208, 0.0
  %v219 = vsel %vm215, %v207, 0.0
  %v220 = vsel %vm216, %v206, 0.0
  %v221 = vsel %vm217, %v209, 0.0
  %222 = vst [vmem:[#allocation2 + $0xa0] sm:$0xff] %v218
  %223 = vst [vmem:[#allocation2 + $0xa8] sm:$0xff] %v219
  %224 = vst [vmem:[#allocation2 + $0xb0] sm:$0xff] %v220
  %225 = vst [vmem:[#allocation2 + $0xb8] sm:$0xff] %v221
  %226 = vrot.lane.b32.xlu0 %v65, 113
  %v227 = vpop.permute.xlu0 %226
  %228 = vrot.lane.b32.xlu0 %v66, 113
  %v229 = vpop.permute.xlu0 %228
  %230 = vrot.lane.b32.xlu0 %v67, 113
  %v231 = vpop.permute.xlu0 %230
  %232 = vrot.lane.b32.xlu0 %v68, 113
  %v233 = vpop.permute.xlu0 %232
  %vm234 = vcmp.lt.s32.totalorder %v21, 113
  %v235 = vsel %vm234, %v231, %v233
  %v236 = vsel %vm234, %v229, %v231
  %v237 = vsel %vm234, %v227, %v229
  %v238 = vsel %vm234, %v233, %v227
  %vm239 = vmand %vm37, %vm41
  %vm240 = vmand %vm38, %vm42
  %vm241 = vmand %vm39, %vm43
  %vm242 = vmand %vm40, %vm44
  %v243 = vsel %vm239, 1, 0
  %v244 = vsel %vm240, 1, 0
  %v245 = vsel %vm241, 1, 0
  %v246 = vsel %vm242, 1, 0
  %vm247 = vcmp.eq.s32.totalorder %v243, 1
  %vm248 = vcmp.eq.s32.totalorder %v244, 1
  %vm249 = vcmp.eq.s32.totalorder %v245, 1
  %vm250 = vcmp.eq.s32.totalorder %v246, 1
  %v251 = vsel %vm247, %v237, 0.0
  %v252 = vsel %vm248, %v236, 0.0
  %v253 = vsel %vm249, %v235, 0.0
  %v254 = vsel %vm250, %v238, 0.0
  %255 = vst [vmem:[#allocation2 + $0xc0] sm:$0xff] %v251
  %256 = vst [vmem:[#allocation2 + $0xc8] sm:$0xff] %v252
  %257 = vst [vmem:[#allocation2 + $0xd0] sm:$0xff] %v253
  %258 = vst [vmem:[#allocation2 + $0xd8] sm:$0xff] %v254
  %259 = vrot.lane.b32.xlu0 %v65, 112
  %v260 = vpop.permute.xlu0 %259
  %261 = vrot.lane.b32.xlu0 %v66, 112
  %v262 = vpop.permute.xlu0 %261
  %263 = vrot.lane.b32.xlu0 %v67, 112
  %v264 = vpop.permute.xlu0 %263
  %265 = vrot.lane.b32.xlu0 %v68, 112
  %v266 = vpop.permute.xlu0 %265
  %vm267 = vcmp.lt.s32.totalorder %v21, 112
  %v268 = vsel %vm267, %v264, %v266
  %v269 = vsel %vm267, %v262, %v264
  %v270 = vsel %vm267, %v260, %v262
  %v271 = vsel %vm267, %v266, %v260
  %v272 = vsel %vm37, 1, 0
  %v273 = vsel %vm38, 1, 0
  %v274 = vsel %vm39, 1, 0
  %v275 = vsel %vm40, 1, 0
  %vm276 = vcmp.eq.s32.totalorder %v272, 1
  %vm277 = vcmp.eq.s32.totalorder %v273, 1
  %vm278 = vcmp.eq.s32.totalorder %v274, 1
  %vm279 = vcmp.eq.s32.totalorder %v275, 1
  %v280 = vsel %vm276, %v270, 0.0
  %v281 = vsel %vm277, %v269, 0.0
  %v282 = vsel %vm278, %v268, 0.0
  %v283 = vsel %vm279, %v271, 0.0
  %284 = vst [vmem:[#allocation2 + $0xe0] sm:$0xff] %v280
  %285 = vst [vmem:[#allocation2 + $0xe8] sm:$0xff] %v281
  %286 = vst [vmem:[#allocation2 + $0xf0] sm:$0xff] %v282
  %287 = vst [vmem:[#allocation2 + $0xf8] sm:$0xff] %v283
  %288 = vrot.lane.b32.xlu0 %v65, 111
  %v289 = vpop.permute.xlu0 %288
  %290 = vrot.lane.b32.xlu0 %v66, 111
  %v291 = vpop.permute.xlu0 %290
  %292 = vrot.lane.b32.xlu0 %v67, 111
  %v293 = vpop.permute.xlu0 %292
  %294 = vrot.lane.b32.xlu0 %v68, 111
  %v295 = vpop.permute.xlu0 %294
  %vm296 = vcmp.lt.s32.totalorder %v21, 111
  %v297 = vsel %vm296, %v293, %v295
  %v298 = vsel %vm296, %v291, %v293
  %v299 = vsel %vm296, %v289, %v291
  %v300 = vsel %vm296, %v295, %v289
  %vm301 = vmand %vm37, %vm45
  %vm302 = vmand %vm38, %vm46
  %vm303 = vmand %vm39, %vm47
  %vm304 = vmand %vm40, %vm48
  %v305 = vsel %vm301, 1, 0
  %v306 = vsel %vm302, 1, 0
  %v307 = vsel %vm303, 1, 0
  %v308 = vsel %vm304, 1, 0
  %vm309 = vcmp.eq.s32.totalorder %v305, 1
  %vm310 = vcmp.eq.s32.totalorder %v306, 1
  %vm311 = vcmp.eq.s32.totalorder %v307, 1
  %vm312 = vcmp.eq.s32.totalorder %v308, 1
  %v313 = vsel %vm309, %v299, 0.0
  %v314 = vsel %vm310, %v298, 0.0
  %v315 = vsel %vm311, %v297, 0.0
  %v316 = vsel %vm312, %v300, 0.0
  %317 = vst [vmem:[#allocation2 + $0x100] sm:$0xff] %v313
  %318 = vst [vmem:[#allocation2 + $0x108] sm:$0xff] %v314
  %319 = vst [vmem:[#allocation2 + $0x110] sm:$0xff] %v315
  %320 = vst [vmem:[#allocation2 + $0x118] sm:$0xff] %v316
  %v321 = vld [vmem:[%s1] sm:$0xff]
  %v322 = vld [vmem:[#allocation2] sm:$0xff]
  %v323 = vld [vmem:[#allocation2 + $0x8] sm:$0xff]
  %v324 = vld [vmem:[#allocation2 + $0x10] sm:$0xff]
  %v325 = vld [vmem:[#allocation2 + $0x18] sm:$0xff]
  %v326 = vld [vmem:[#allocation2 + $0x20] sm:$0xff]
  %v327 = vld [vmem:[#allocation2 + $0x28] sm:$0xff]
  %v328 = vld [vmem:[#allocation2 + $0x30] sm:$0xff]
  %v329 = vld [vmem:[#allocation2 + $0x38] sm:$0xff]
  %v330 = vld [vmem:[#allocation2 + $0x40] sm:$0xff]
  %v331 = vld [vmem:[#allocation2 + $0x48] sm:$0xff]
  %v332 = vld [vmem:[#allocation2 + $0x50] sm:$0xff]
  %v333 = vld [vmem:[#allocation2 + $0x58] sm:$0xff]
  %v334 = vld [vmem:[#allocation2 + $0x60] sm:$0xff]
  %v335 = vld [vmem:[#allocation2 + $0x68] sm:$0xff]
  %v336 = vld [vmem:[#allocation2 + $0x70] sm:$0xff]
  %v337 = vld [vmem:[#allocation2 + $0x78] sm:$0xff]
  %v338 = vld [vmem:[#allocation2 + $0x80] sm:$0xff]
  %v339 = vld [vmem:[#allocation2 + $0x88] sm:$0xff]
  %v340 = vld [vmem:[#allocation2 + $0x90] sm:$0xff]
  %v341 = vld [vmem:[#allocation2 + $0x98] sm:$0xff]
  %v342 = vld [vmem:[#allocation2 + $0xa0] sm:$0xff]
  %v343 = vld [vmem:[#allocation2 + $0xa8] sm:$0xff]
  %v344 = vld [vmem:[#allocation2 + $0xb0] sm:$0xff]
  %v345 = vld [vmem:[#allocation2 + $0xb8] sm:$0xff]
  %v346 = vld [vmem:[#allocation2 + $0xc0] sm:$0xff]
  %v347 = vld [vmem:[#allocation2 + $0xc8] sm:$0xff]
  %v348 = vld [vmem:[#allocation2 + $0xd0] sm:$0xff]
  %v349 = vld [vmem:[#allocation2 + $0xd8] sm:$0xff]
  %v350 = vld [vmem:[#allocation2 + $0xe0] sm:$0xff]
  %v351 = vld [vmem:[#allocation2 + $0xe8] sm:$0xff]
  %v352 = vld [vmem:[#allocation2 + $0xf0] sm:$0xff]
  %v353 = vld [vmem:[#allocation2 + $0xf8] sm:$0xff]
  %v354 = vld [vmem:[#allocation2 + $0x100] sm:$0xff]
  %v355 = vld [vmem:[#allocation2 + $0x108] sm:$0xff]
  %v356 = vld [vmem:[#allocation2 + $0x110] sm:$0xff]
  %v357 = vld [vmem:[#allocation2 + $0x118] sm:$0xff]
  %v358 = vld [vmem:[%s2] sm:$0xff]
  %360 = vset.pattern.permute.xlu0 0
  %361 = vperm.xlu0 %360, %v358
  %v362 = vpop.permute.xlu0 %361
  %vm364 = vcmask 588800
  %v366 = vsel %vm364, %v321, 0
  %368 = vmatprep.subr.mxu0 %v323
  %369 = vmatpush1.msra.mxu0 %v322
  %370 = vmatprep.subr.mxu0 %v327
  %371 = vmatpush1.msra.mxu0 %v326
  %372 = vmatprep.subr.mxu0 %v331
  %373 = vmatpush1.msra.mxu0 %v330
  %374 = vmatprep.subr.mxu0 %v335
  %375 = vmatpush1.msra.mxu0 %v334
  %376 = vmatprep.subr.mxu0 %v339
  %377 = vmatpush1.msra.mxu0 %v338
  %378 = vmatprep.subr.mxu0 %v343
  %379 = vmatpush1.msra.mxu0 %v342
  %380 = vmatprep.subr.mxu0 %v347
  %381 = vmatpush1.msra.mxu0 %v346
  %382 = vmatprep.subr.mxu0 %v351
  %383 = vmatpush1.msra.mxu0 %v350
  %384 = vmatprep.subr.mxu0 %v355
  %385 = vmatpush1.msra.mxu0 %v354
  %386 = vmatprep.subr.mxu0 0.0
  %387 = vmatpush1.msra.mxu0 0.0
  %388 = vmatprep.subr.mxu0 0.0
  %389 = vmatpush1.msra.mxu0 0.0
  %390 = vmatprep.subr.mxu0 0.0
  %391 = vmatpush1.msra.mxu0 0.0
  %392 = vmatprep.subr.mxu0 0.0
  %393 = vmatpush1.msra.mxu0 0.0
  %394 = vmatprep.subr.mxu0 0.0
  %395 = vmatpush1.msra.mxu0 0.0
  %396 = vmatprep.subr.mxu0 0.0
  %397 = vmatpush1.msra.mxu0 0.0
  %398 = vmatprep.subr.mxu0 0.0
  %399 = vmatpush1.msra.mxu0 0.0
  %400 = vmatprep.subr.mxu0 0.0
  %401 = vmatpush1.msra.mxu0 0.0
  %402 = vmatprep.subr.mxu0 0.0
  %403 = vmatpush1.msra.mxu0 0.0
  %404 = vmatprep.subr.mxu0 0.0
  %405 = vmatpush1.msra.mxu0 0.0
  %406 = vmatprep.subr.mxu0 0.0
  %407 = vmatpush1.msra.mxu0 0.0
  %408 = vmatprep.subr.mxu0 0.0
  %409 = vmatpush1.msra.mxu0 0.0
  %410 = vmatprep.subr.mxu0 0.0
  %411 = vmatpush1.msra.mxu0 0.0
  %412 = vmatprep.subr.mxu0 0.0
  %413 = vmatpush1.msra.mxu0 0.0
  %414 = vmatprep.subr.mxu0 0.0
  %415 = vmatpush1.msra.mxu0 0.0
  %416 = vmatprep.subr.mxu0 0.0
  %417 = vmatpush1.msra.mxu0 0.0
  %418 = vmatprep.subr.mxu0 0.0
  %419 = vmatpush1.msra.mxu0 0.0
  %420 = vmatprep.subr.mxu0 0.0
  %421 = vmatpush1.msra.mxu0 0.0
  %422 = vmatprep.subr.mxu0 0.0
  %423 = vmatpush1.msra.mxu0 0.0
  %424 = vmatprep.subr.mxu0 0.0
  %425 = vmatpush1.msra.mxu0 0.0
  %426 = vmatprep.subr.mxu0 0.0
  %427 = vmatpush1.msra.mxu0 0.0
  %428 = vmatprep.subr.mxu0 0.0
  %429 = vmatpush1.msra.mxu0 0.0
  %430 = vmatprep.subr.mxu0 0.0
  %431 = vmatpush1.msra.mxu0 0.0
  %432 = vmatprep.mubr.f32.mxu0 0.0
  %433 = vmatmul.mubr.f32.gmra.mrb[0].mxu0 %v366
  %v434 = vpop.f32.mrb[0].mxu0
  %v435 = vadd.f32 %v362, %v434
  %v436 = vpop.f32.mrb[0].mxu0
  %v437 = vadd.f32 %v362, %v436
  %438 = vdwg.mxu0
  %439 = vmatprep.subr.mxu0 %v325
  %440 = vmatpush1.msra.mxu0 %v324
  %441 = vmatprep.subr.mxu0 %v329
  %442 = vmatpush1.msra.mxu0 %v328
  %443 = vmatprep.subr.mxu0 %v333
  %444 = vmatpush1.msra.mxu0 %v332
  %445 = vmatprep.subr.mxu0 %v337
  %446 = vmatpush1.msra.mxu0 %v336
  %447 = vmatprep.subr.mxu0 %v341
  %448 = vmatpush1.msra.mxu0 %v340
  %449 = vmatprep.subr.mxu0 %v345
  %450 = vmatpush1.msra.mxu0 %v344
  %451 = vmatprep.subr.mxu0 %v349
  %452 = vmatpush1.msra.mxu0 %v348
  %453 = vmatprep.subr.mxu0 %v353
  %454 = vmatpush1.msra.mxu0 %v352
  %455 = vmatprep.subr.mxu0 %v357
  %456 = vmatpush1.msra.mxu0 %v356
  %457 = vmatprep.subr.mxu0 0.0
  %458 = vmatpush1.msra.mxu0 0.0
  %459 = vmatprep.subr.mxu0 0.0
  %460 = vmatpush1.msra.mxu0 0.0
  %461 = vmatprep.subr.mxu0 0.0
  %462 = vmatpush1.msra.mxu0 0.0
  %463 = vmatprep.subr.mxu0 0.0
  %464 = vmatpush1.msra.mxu0 0.0
  %465 = vmatprep.subr.mxu0 0.0
  %466 = vmatpush1.msra.mxu0 0.0
  %467 = vmatprep.subr.mxu0 0.0
  %468 = vmatpush1.msra.mxu0 0.0
  %469 = vmatprep.subr.mxu0 0.0
  %470 = vmatpush1.msra.mxu0 0.0
  %471 = vmatprep.subr.mxu0 0.0
  %472 = vmatpush1.msra.mxu0 0.0
  %473 = vmatprep.subr.mxu0 0.0
  %474 = vmatpush1.msra.mxu0 0.0
  %475 = vmatprep.subr.mxu0 0.0
  %476 = vmatpush1.msra.mxu0 0.0
  %477 = vmatprep.subr.mxu0 0.0
  %478 = vmatpush1.msra.mxu0 0.0
  %479 = vmatprep.subr.mxu0 0.0
  %480 = vmatpush1.msra.mxu0 0.0
  %481 = vmatprep.subr.mxu0 0.0
  %482 = vmatpush1.msra.mxu0 0.0
  %483 = vmatprep.subr.mxu0 0.0
  %484 = vmatpush1.msra.mxu0 0.0
  %485 = vmatprep.subr.mxu0 0.0
  %486 = vmatpush1.msra.mxu0 0.0
  %487 = vmatprep.subr.mxu0 0.0
  %488 = vmatpush1.msra.mxu0 0.0
  %489 = vmatprep.subr.mxu0 0.0
  %490 = vmatpush1.msra.mxu0 0.0
  %491 = vmatprep.subr.mxu0 0.0
  %492 = vmatpush1.msra.mxu0 0.0
  %493 = vmatprep.subr.mxu0 0.0
  %494 = vmatpush1.msra.mxu0 0.0
  %495 = vmatprep.subr.mxu0 0.0
  %496 = vmatpush1.msra.mxu0 0.0
  %497 = vmatprep.subr.mxu0 0.0
  %498 = vmatpush1.msra.mxu0 0.0
  %499 = vmatprep.subr.mxu0 0.0
  %500 = vmatpush1.msra.mxu0 0.0
  %501 = vmatprep.subr.mxu0 0.0
  %502 = vmatpush1.msra.mxu0 0.0
  %503 = vmatprep.mubr.f32.mxu0 0.0
  %504 = vmatmul.mubr.f32.gmra.mrb[0].mxu0 %v366
  %v505 = vpop.f32.mrb[0].mxu0
  %v506 = vadd.f32 %v362, %v505
  %v507 = vpop.f32.mrb[0].mxu0
  %v508 = vadd.f32 %v362, %v507
  %509 = vdwg.mxu0
  %v510 = vmax.f32 %v435, 0.0
  %v511 = vmax.f32 %v437, 0.0
  %v512 = vmax.f32 %v506, 0.0
  %v513 = vmax.f32 %v508, 0.0
  %v514 = vadd.f32 %v510, %v65
  %v515 = vadd.f32 %v511, %v66
  %v516 = vadd.f32 %v512, %v67
  %v517 = vadd.f32 %v513, %v68
  %v518 = vmax.f32 %v514, 0.0
  %v519 = vmax.f32 %v515, 0.0
  %v520 = vmax.f32 %v516, 0.0
  %v521 = vmax.f32 %v517, 0.0
  %522 = vrot.lane.b32.xlu0 %v518, 34
  %v523 = vpop.permute.xlu0 %522
  %524 = vrot.lane.b32.xlu0 %v519, 34
  %v525 = vpop.permute.xlu0 %524
  %526 = vrot.lane.b32.xlu0 %v520, 34
  %v527 = vpop.permute.xlu0 %526
  %528 = vrot.lane.b32.xlu0 %v521, 34
  %v529 = vpop.permute.xlu0 %528
  %vm530 = vcmp.lt.s32.totalorder %v21, 34
  %v531 = vsel %vm530, %v527, %v529
  %v532 = vsel %vm530, %v525, %v527
  %v533 = vsel %vm530, %v523, %v525
  %v534 = vsel %vm530, %v529, %v523
  %vm535 = vmand %vm49, %vm57
  %vm536 = vmand %vm50, %vm58
  %vm537 = vmand %vm51, %vm59
  %vm538 = vmand %vm52, %vm60
  %v539 = vsel %vm535, 1, 0
  %v540 = vsel %vm536, 1, 0
  %v541 = vsel %vm537, 1, 0
  %v542 = vsel %vm538, 1, 0
  %vm543 = vcmp.eq.s32.totalorder %v539, 1
  %vm544 = vcmp.eq.s32.totalorder %v540, 1
  %vm545 = vcmp.eq.s32.totalorder %v541, 1
  %vm546 = vcmp.eq.s32.totalorder %v542, 1
  %v547 = vsel %vm543, %v534, 0.0
  %v548 = vsel %vm544, %v533, 0.0
  %v549 = vsel %vm545, %v532, 0.0
  %v550 = vsel %vm546, %v531, 0.0
  %551 = vst [vmem:[#allocation3] sm:$0xff] %v547
  %552 = vst [vmem:[#allocation3 + $0x8] sm:$0xff] %v548
  %553 = vst [vmem:[#allocation3 + $0x10] sm:$0xff] %v549
  %554 = vst [vmem:[#allocation3 + $0x18] sm:$0xff] %v550
  %555 = vrot.lane.b32.xlu0 %v518, 33
  %v556 = vpop.permute.xlu0 %555
  %557 = vrot.lane.b32.xlu0 %v519, 33
  %v558 = vpop.permute.xlu0 %557
  %559 = vrot.lane.b32.xlu0 %v520, 33
  %v560 = vpop.permute.xlu0 %559
  %561 = vrot.lane.b32.xlu0 %v521, 33
  %v562 = vpop.permute.xlu0 %561
  %vm563 = vcmp.lt.s32.totalorder %v21, 33
  %v564 = vsel %vm563, %v560, %v562
  %v565 = vsel %vm563, %v558, %v560
  %v566 = vsel %vm563, %v556, %v558
  %v567 = vsel %vm563, %v562, %v556
  %vm568 = vmand %vm49, %vm41
  %vm569 = vmand %vm50, %vm42
  %vm570 = vmand %vm51, %vm43
  %vm571 = vmand %vm52, %vm44
  %v572 = vsel %vm568, 1, 0
  %v573 = vsel %vm569, 1, 0
  %v574 = vsel %vm570, 1, 0
  %v575 = vsel %vm571, 1, 0
  %vm576 = vcmp.eq.s32.totalorder %v572, 1
  %vm577 = vcmp.eq.s32.totalorder %v573, 1
  %vm578 = vcmp.eq.s32.totalorder %v574, 1
  %vm579 = vcmp.eq.s32.totalorder %v575, 1
  %v580 = vsel %vm576, %v567, 0.0
  %v581 = vsel %vm577, %v566, 0.0
  %v582 = vsel %vm578, %v565, 0.0
  %v583 = vsel %vm579, %v564, 0.0
  %584 = vst [vmem:[#allocation3 + $0x20] sm:$0xff] %v580
  %585 = vst [vmem:[#allocation3 + $0x28] sm:$0xff] %v581
  %586 = vst [vmem:[#allocation3 + $0x30] sm:$0xff] %v582
  %587 = vst [vmem:[#allocation3 + $0x38] sm:$0xff] %v583
  %588 = vrot.lane.b32.xlu0 %v518, 32
  %v589 = vpop.permute.xlu0 %588
  %590 = vrot.lane.b32.xlu0 %v519, 32
  %v591 = vpop.permute.xlu0 %590
  %592 = vrot.lane.b32.xlu0 %v520, 32
  %v593 = vpop.permute.xlu0 %592
  %594 = vrot.lane.b32.xlu0 %v521, 32
  %v595 = vpop.permute.xlu0 %594
  %vm596 = vcmp.lt.s32.totalorder %v21, 32
  %v597 = vsel %vm596, %v593, %v595
  %v598 = vsel %vm596, %v591, %v593
  %v599 = vsel %vm596, %v589, %v591
  %v600 = vsel %vm596, %v595, %v589
  %v601 = vsel %vm49, 1, 0
  %v602 = vsel %vm50, 1, 0
  %v603 = vsel %vm51, 1, 0
  %v604 = vsel %vm52, 1, 0
  %vm605 = vcmp.eq.s32.totalorder %v601, 1
  %vm606 = vcmp.eq.s32.totalorder %v602, 1
  %vm607 = vcmp.eq.s32.totalorder %v603, 1
  %vm608 = vcmp.eq.s32.totalorder %v604, 1
  %v609 = vsel %vm605, %v600, 0.0
  %v610 = vsel %vm606, %v599, 0.0
  %v611 = vsel %vm607, %v598, 0.0
  %v612 = vsel %vm608, %v597, 0.0
  %613 = vst [vmem:[#allocation3 + $0x40] sm:$0xff] %v609
  %614 = vst [vmem:[#allocation3 + $0x48] sm:$0xff] %v610
  %615 = vst [vmem:[#allocation3 + $0x50] sm:$0xff] %v611
  %616 = vst [vmem:[#allocation3 + $0x58] sm:$0xff] %v612
  %617 = vrot.lane.b32.xlu0 %v518, 31
  %v618 = vpop.permute.xlu0 %617
  %619 = vrot.lane.b32.xlu0 %v519, 31
  %v620 = vpop.permute.xlu0 %619
  %621 = vrot.lane.b32.xlu0 %v520, 31
  %v622 = vpop.permute.xlu0 %621
  %623 = vrot.lane.b32.xlu0 %v521, 31
  %v624 = vpop.permute.xlu0 %623
  %vm625 = vcmp.lt.s32.totalorder %v21, 31
  %v626 = vsel %vm625, %v622, %v624
  %v627 = vsel %vm625, %v620, %v622
  %v628 = vsel %vm625, %v618, %v620
  %v629 = vsel %vm625, %v624, %v618
  %vm630 = vmand %vm49, %vm45
  %vm631 = vmand %vm50, %vm46
  %vm632 = vmand %vm51, %vm47
  %vm633 = vmand %vm52, %vm48
  %v634 = vsel %vm630, 1, 0
  %v635 = vsel %vm631, 1, 0
  %v636 = vsel %vm632, 1, 0
  %v637 = vsel %vm633, 1, 0
  %vm638 = vcmp.eq.s32.totalorder %v634, 1
  %vm639 = vcmp.eq.s32.totalorder %v635, 1
  %vm640 = vcmp.eq.s32.totalorder %v636, 1
  %vm641 = vcmp.eq.s32.totalorder %v637, 1
  %v642 = vsel %vm638, %v629, 0.0
  %v643 = vsel %vm639, %v628, 0.0
  %v644 = vsel %vm640, %v627, 0.0
  %v645 = vsel %vm641, %v626, 0.0
  %646 = vst [vmem:[#allocation3 + $0x60] sm:$0xff] %v642
  %647 = vst [vmem:[#allocation3 + $0x68] sm:$0xff] %v643
  %648 = vst [vmem:[#allocation3 + $0x70] sm:$0xff] %v644
  %649 = vst [vmem:[#allocation3 + $0x78] sm:$0xff] %v645
  %650 = vrot.lane.b32.xlu0 %v518, 30
  %v651 = vpop.permute.xlu0 %650
  %652 = vrot.lane.b32.xlu0 %v519, 30
  %v653 = vpop.permute.xlu0 %652
  %654 = vrot.lane.b32.xlu0 %v520, 30
  %v655 = vpop.permute.xlu0 %654
  %656 = vrot.lane.b32.xlu0 %v521, 30
  %v657 = vpop.permute.xlu0 %656
  %vm658 = vcmp.lt.s32.totalorder %v21, 30
  %v659 = vsel %vm658, %v655, %v657
  %v660 = vsel %vm658, %v653, %v655
  %v661 = vsel %vm658, %v651, %v653
  %v662 = vsel %vm658, %v657, %v651
  %vm663 = vmand %vm49, %vm61
  %vm664 = vmand %vm50, %vm62
  %vm665 = vmand %vm51, %vm63
  %vm666 = vmand %vm52, %vm64
  %v667 = vsel %vm663, 1, 0
  %v668 = vsel %vm664, 1, 0
  %v669 = vsel %vm665, 1, 0
  %v670 = vsel %vm666, 1, 0
  %vm671 = vcmp.eq.s32.totalorder %v667, 1
  %vm672 = vcmp.eq.s32.totalorder %v668, 1
  %vm673 = vcmp.eq.s32.totalorder %v669, 1
  %vm674 = vcmp.eq.s32.totalorder %v670, 1
  %v675 = vsel %vm671, %v662, 0.0
  %v676 = vsel %vm672, %v661, 0.0
  %v677 = vsel %vm673, %v660, 0.0
  %v678 = vsel %vm674, %v659, 0.0
  %679 = vst [vmem:[#allocation3 + $0x80] sm:$0xff] %v675
  %680 = vst [vmem:[#allocation3 + $0x88] sm:$0xff] %v676
  %681 = vst [vmem:[#allocation3 + $0x90] sm:$0xff] %v677
  %682 = vst [vmem:[#allocation3 + $0x98] sm:$0xff] %v678
  %683 = vrot.lane.b32.xlu0 %v518, 18
  %v684 = vpop.permute.xlu0 %683
  %685 = vrot.lane.b32.xlu0 %v519, 18
  %v686 = vpop.permute.xlu0 %685
  %687 = vrot.lane.b32.xlu0 %v520, 18
  %v688 = vpop.permute.xlu0 %687
  %689 = vrot.lane.b32.xlu0 %v521, 18
  %v690 = vpop.permute.xlu0 %689
  %vm691 = vcmp.lt.s32.totalorder %v21, 18
  %v692 = vsel %vm691, %v688, %v690
  %v693 = vsel %vm691, %v686, %v688
  %v694 = vsel %vm691, %v684, %v686
  %v695 = vsel %vm691, %v690, %v684
  %vm696 = vmand %vm33, %vm57
  %vm697 = vmand %vm34, %vm58
  %vm698 = vmand %vm35, %vm59
  %vm699 = vmand %vm36, %vm60
  %v700 = vsel %vm696, 1, 0
  %v701 = vsel %vm697, 1, 0
  %v702 = vsel %vm698, 1, 0
  %v703 = vsel %vm699, 1, 0
  %vm704 = vcmp.eq.s32.totalorder %v700, 1
  %vm705 = vcmp.eq.s32.totalorder %v701, 1
  %vm706 = vcmp.eq.s32.totalorder %v702, 1
  %vm707 = vcmp.eq.s32.totalorder %v703, 1
  %v708 = vsel %vm704, %v695, 0.0
  %v709 = vsel %vm705, %v694, 0.0
  %v710 = vsel %vm706, %v693, 0.0
  %v711 = vsel %vm707, %v692, 0.0
  %712 = vst [vmem:[#allocation3 + $0xa0] sm:$0xff] %v708
  %713 = vst [vmem:[#allocation3 + $0xa8] sm:$0xff] %v709
  %714 = vst [vmem:[#allocation3 + $0xb0] sm:$0xff] %v710
  %715 = vst [vmem:[#allocation3 + $0xb8] sm:$0xff] %v711
  %716 = vrot.lane.b32.xlu0 %v518, 17
  %v717 = vpop.permute.xlu0 %716
  %718 = vrot.lane.b32.xlu0 %v519, 17
  %v719 = vpop.permute.xlu0 %718
  %720 = vrot.lane.b32.xlu0 %v520, 17
  %v721 = vpop.permute.xlu0 %720
  %722 = vrot.lane.b32.xlu0 %v521, 17
  %v723 = vpop.permute.xlu0 %722
  %v724 = vsel %vm77, %v721, %v723
  %v725 = vsel %vm77, %v719, %v721
  %v726 = vsel %vm77, %v717, %v719
  %v727 = vsel %vm77, %v723, %v717
  %v728 = vsel %vm90, %v727, 0.0
  %v729 = vsel %vm91, %v726, 0.0
  %v730 = vsel %vm92, %v725, 0.0
  %v731 = vsel %vm93, %v724, 0.0
  %732 = vst [vmem:[#allocation3 + $0xc0] sm:$0xff] %v728
  %733 = vst [vmem:[#allocation3 + $0xc8] sm:$0xff] %v729
  %734 = vst [vmem:[#allocation3 + $0xd0] sm:$0xff] %v730
  %735 = vst [vmem:[#allocation3 + $0xd8] sm:$0xff] %v731
  %736 = vrot.lane.b32.xlu0 %v518, 16
  %v737 = vpop.permute.xlu0 %736
  %738 = vrot.lane.b32.xlu0 %v519, 16
  %v739 = vpop.permute.xlu0 %738
  %740 = vrot.lane.b32.xlu0 %v520, 16
  %v741 = vpop.permute.xlu0 %740
  %742 = vrot.lane.b32.xlu0 %v521, 16
  %v743 = vpop.permute.xlu0 %742
  %v744 = vsel %vm110, %v741, %v743
  %v745 = vsel %vm110, %v739, %v741
  %v746 = vsel %vm110, %v737, %v739
  %v747 = vsel %vm110, %v743, %v737
  %v748 = vsel %vm119, %v747, 0.0
  %v749 = vsel %vm120, %v746, 0.0
  %v750 = vsel %vm121, %v745, 0.0
  %v751 = vsel %vm122, %v744, 0.0
  %752 = vst [vmem:[#allocation3 + $0xe0] sm:$0xff] %v748
  %753 = vst [vmem:[#allocation3 + $0xe8] sm:$0xff] %v749
  %754 = vst [vmem:[#allocation3 + $0xf0] sm:$0xff] %v750
  %755 = vst [vmem:[#allocation3 + $0xf8] sm:$0xff] %v751
  %756 = vrot.lane.b32.xlu0 %v518, 15
  %v757 = vpop.permute.xlu0 %756
  %758 = vrot.lane.b32.xlu0 %v519, 15
  %v759 = vpop.permute.xlu0 %758
  %760 = vrot.lane.b32.xlu0 %v520, 15
  %v761 = vpop.permute.xlu0 %760
  %762 = vrot.lane.b32.xlu0 %v521, 15
  %v763 = vpop.permute.xlu0 %762
  %v764 = vsel %vm139, %v761, %v763
  %v765 = vsel %vm139, %v759, %v761
  %v766 = vsel %vm139, %v757, %v759
  %v767 = vsel %vm139, %v763, %v757
  %v768 = vsel %vm152, %v767, 0.0
  %v769 = vsel %vm153, %v766, 0.0
  %v770 = vsel %vm154, %v765, 0.0
  %v771 = vsel %vm155, %v764, 0.0
  %772 = vst [vmem:[#allocation3 + $0x100] sm:$0xff] %v768
  %773 = vst [vmem:[#allocation3 + $0x108] sm:$0xff] %v769
  %774 = vst [vmem:[#allocation3 + $0x110] sm:$0xff] %v770
  %775 = vst [vmem:[#allocation3 + $0x118] sm:$0xff] %v771
  %776 = vrot.lane.b32.xlu0 %v518, 14
  %v777 = vpop.permute.xlu0 %776
  %778 = vrot.lane.b32.xlu0 %v519, 14
  %v779 = vpop.permute.xlu0 %778
  %780 = vrot.lane.b32.xlu0 %v520, 14
  %v781 = vpop.permute.xlu0 %780
  %782 = vrot.lane.b32.xlu0 %v521, 14
  %v783 = vpop.permute.xlu0 %782
  %vm784 = vcmp.lt.s32.totalorder %v21, 14
  %v785 = vsel %vm784, %v781, %v783
  %v786 = vsel %vm784, %v779, %v781
  %v787 = vsel %vm784, %v777, %v779
  %v788 = vsel %vm784, %v783, %v777
  %vm789 = vmand %vm33, %vm61
  %vm790 = vmand %vm34, %vm62
  %vm791 = vmand %vm35, %vm63
  %vm792 = vmand %vm36, %vm64
  %v793 = vsel %vm789, 1, 0
  %v794 = vsel %vm790, 1, 0
  %v795 = vsel %vm791, 1, 0
  %v796 = vsel %vm792, 1, 0
  %vm797 = vcmp.eq.s32.totalorder %v793, 1
  %vm798 = vcmp.eq.s32.totalorder %v794, 1
  %vm799 = vcmp.eq.s32.totalorder %v795, 1
  %vm800 = vcmp.eq.s32.totalorder %v796, 1
  %v801 = vsel %vm797, %v788, 0.0
  %v802 = vsel %vm798, %v787, 0.0
  %v803 = vsel %vm799, %v786, 0.0
  %v804 = vsel %vm800, %v785, 0.0
  %805 = vst [vmem:[#allocation3 + $0x120] sm:$0xff] %v801
  %806 = vst [vmem:[#allocation3 + $0x128] sm:$0xff] %v802
  %807 = vst [vmem:[#allocation3 + $0x130] sm:$0xff] %v803
  %808 = vst [vmem:[#allocation3 + $0x138] sm:$0xff] %v804
  %809 = vrot.lane.b32.xlu0 %v518, 2
  %v810 = vpop.permute.xlu0 %809
  %811 = vrot.lane.b32.xlu0 %v519, 2
  %v812 = vpop.permute.xlu0 %811
  %813 = vrot.lane.b32.xlu0 %v520, 2
  %v814 = vpop.permute.xlu0 %813
  %815 = vrot.lane.b32.xlu0 %v521, 2
  %v816 = vpop.permute.xlu0 %815
  %vm817 = vcmp.lt.s32.totalorder %v21, 2
  %v818 = vsel %vm817, %v814, %v816
  %v819 = vsel %vm817, %v812, %v814
  %v820 = vsel %vm817, %v810, %v812
  %v821 = vsel %vm817, %v816, %v810
  %v822 = vsel %vm57, 1, 0
  %v823 = vsel %vm58, 1, 0
  %v824 = vsel %vm59, 1, 0
  %v825 = vsel %vm60, 1, 0
  %vm826 = vcmp.eq.s32.totalorder %v822, 1
  %vm827 = vcmp.eq.s32.totalorder %v823, 1
  %vm828 = vcmp.eq.s32.totalorder %v824, 1
  %vm829 = vcmp.eq.s32.totalorder %v825, 1
  %v830 = vsel %vm826, %v821, 0.0
  %v831 = vsel %vm827, %v820, 0.0
  %v832 = vsel %vm828, %v819, 0.0
  %v833 = vsel %vm829, %v818, 0.0
  %834 = vst [vmem:[#allocation3 + $0x140] sm:$0xff] %v830
  %835 = vst [vmem:[#allocation3 + $0x148] sm:$0xff] %v831
  %836 = vst [vmem:[#allocation3 + $0x150] sm:$0xff] %v832
  %837 = vst [vmem:[#allocation3 + $0x158] sm:$0xff] %v833
  %838 = vrot.lane.b32.xlu0 %v518, 1
  %v839 = vpop.permute.xlu0 %838
  %840 = vrot.lane.b32.xlu0 %v519, 1
  %v841 = vpop.permute.xlu0 %840
  %842 = vrot.lane.b32.xlu0 %v520, 1
  %v843 = vpop.permute.xlu0 %842
  %844 = vrot.lane.b32.xlu0 %v521, 1
  %v845 = vpop.permute.xlu0 %844
  %v846 = vsel %vm172, %v843, %v845
  %v847 = vsel %vm172, %v841, %v843
  %v848 = vsel %vm172, %v839, %v841
  %v849 = vsel %vm172, %v845, %v839
  %v850 = vsel %vm181, %v849, 0.0
  %v851 = vsel %vm182, %v848, 0.0
  %v852 = vsel %vm183, %v847, 0.0
  %v853 = vsel %vm184, %v846, 0.0
  %854 = vst [vmem:[#allocation3 + $0x160] sm:$0xff] %v850
  %855 = vst [vmem:[#allocation3 + $0x168] sm:$0xff] %v851
  %856 = vst [vmem:[#allocation3 + $0x170] sm:$0xff] %v852
  %857 = vst [vmem:[#allocation3 + $0x178] sm:$0xff] %v853
  %858 = vst [vmem:[#allocation3 + $0x180] sm:$0xff] %v518
  %859 = vst [vmem:[#allocation3 + $0x188] sm:$0xff] %v519
  %860 = vst [vmem:[#allocation3 + $0x190] sm:$0xff] %v520
  %861 = vst [vmem:[#allocation3 + $0x198] sm:$0xff] %v521
  %862 = vrot.lane.b32.xlu0 %v518, 127
  %v863 = vpop.permute.xlu0 %862
  %864 = vrot.lane.b32.xlu0 %v519, 127
  %v865 = vpop.permute.xlu0 %864
  %866 = vrot.lane.b32.xlu0 %v520, 127
  %v867 = vpop.permute.xlu0 %866
  %868 = vrot.lane.b32.xlu0 %v521, 127
  %v869 = vpop.permute.xlu0 %868
  %v870 = vsel %vm205, %v867, %v869
  %v871 = vsel %vm205, %v865, %v867
  %v872 = vsel %vm205, %v863, %v865
  %v873 = vsel %vm205, %v869, %v863
  %v874 = vsel %vm214, %v872, 0.0
  %v875 = vsel %vm215, %v871, 0.0
  %v876 = vsel %vm216, %v870, 0.0
  %v877 = vsel %vm217, %v873, 0.0
  %878 = vst [vmem:[#allocation3 + $0x1a0] sm:$0xff] %v874
  %879 = vst [vmem:[#allocation3 + $0x1a8] sm:$0xff] %v875
  %880 = vst [vmem:[#allocation3 + $0x1b0] sm:$0xff] %v876
  %881 = vst [vmem:[#allocation3 + $0x1b8] sm:$0xff] %v877
  %882 = vrot.lane.b32.xlu0 %v518, 126
  %v883 = vpop.permute.xlu0 %882
  %884 = vrot.lane.b32.xlu0 %v519, 126
  %v885 = vpop.permute.xlu0 %884
  %886 = vrot.lane.b32.xlu0 %v520, 126
  %v887 = vpop.permute.xlu0 %886
  %888 = vrot.lane.b32.xlu0 %v521, 126
  %v889 = vpop.permute.xlu0 %888
  %vm890 = vcmp.lt.s32.totalorder %v21, 126
  %v891 = vsel %vm890, %v887, %v889
  %v892 = vsel %vm890, %v885, %v887
  %v893 = vsel %vm890, %v883, %v885
  %v894 = vsel %vm890, %v889, %v883
  %v895 = vsel %vm61, 1, 0
  %v896 = vsel %vm62, 1, 0
  %v897 = vsel %vm63, 1, 0
  %v898 = vsel %vm64, 1, 0
  %vm899 = vcmp.eq.s32.totalorder %v895, 1
  %vm900 = vcmp.eq.s32.totalorder %v896, 1
  %vm901 = vcmp.eq.s32.totalorder %v897, 1
  %vm902 = vcmp.eq.s32.totalorder %v898, 1
  %v903 = vsel %vm899, %v893, 0.0
  %v904 = vsel %vm900, %v892, 0.0
  %v905 = vsel %vm901, %v891, 0.0
  %v906 = vsel %vm902, %v894, 0.0
  %907 = vst [vmem:[#allocation3 + $0x1c0] sm:$0xff] %v903
  %908 = vst [vmem:[#allocation3 + $0x1c8] sm:$0xff] %v904
  %909 = vst [vmem:[#allocation3 + $0x1d0] sm:$0xff] %v905
  %910 = vst [vmem:[#allocation3 + $0x1d8] sm:$0xff] %v906
  %911 = vrot.lane.b32.xlu0 %v518, 114
  %v912 = vpop.permute.xlu0 %911
  %913 = vrot.lane.b32.xlu0 %v519, 114
  %v914 = vpop.permute.xlu0 %913
  %915 = vrot.lane.b32.xlu0 %v520, 114
  %v916 = vpop.permute.xlu0 %915
  %917 = vrot.lane.b32.xlu0 %v521, 114
  %v918 = vpop.permute.xlu0 %917
  %vm919 = vcmp.lt.s32.totalorder %v21, 114
  %v920 = vsel %vm919, %v916, %v918
  %v921 = vsel %vm919, %v914, %v916
  %v922 = vsel %vm919, %v912, %v914
  %v923 = vsel %vm919, %v918, %v912
  %vm924 = vmand %vm37, %vm57
  %vm925 = vmand %vm38, %vm58
  %vm926 = vmand %vm39, %vm59
  %vm927 = vmand %vm40, %vm60
  %v928 = vsel %vm924, 1, 0
  %v929 = vsel %vm925, 1, 0
  %v930 = vsel %vm926, 1, 0
  %v931 = vsel %vm927, 1, 0
  %vm932 = vcmp.eq.s32.totalorder %v928, 1
  %vm933 = vcmp.eq.s32.totalorder %v929, 1
  %vm934 = vcmp.eq.s32.totalorder %v930, 1
  %vm935 = vcmp.eq.s32.totalorder %v931, 1
  %v936 = vsel %vm932, %v922, 0.0
  %v937 = vsel %vm933, %v921, 0.0
  %v938 = vsel %vm934, %v920, 0.0
  %v939 = vsel %vm935, %v923, 0.0
  %940 = vst [vmem:[#allocation3 + $0x1e0] sm:$0xff] %v936
  %941 = vst [vmem:[#allocation3 + $0x1e8] sm:$0xff] %v937
  %942 = vst [vmem:[#allocation3 + $0x1f0] sm:$0xff] %v938
  %943 = vst [vmem:[#allocation3 + $0x1f8] sm:$0xff] %v939
  %944 = vrot.lane.b32.xlu0 %v518, 113
  %v945 = vpop.permute.xlu0 %944
  %946 = vrot.lane.b32.xlu0 %v519, 113
  %v947 = vpop.permute.xlu0 %946
  %948 = vrot.lane.b32.xlu0 %v520, 113
  %v949 = vpop.permute.xlu0 %948
  %950 = vrot.lane.b32.xlu0 %v521, 113
  %v951 = vpop.permute.xlu0 %950
  %v952 = vsel %vm234, %v949, %v951
  %v953 = vsel %vm234, %v947, %v949
  %v954 = vsel %vm234, %v945, %v947
  %v955 = vsel %vm234, %v951, %v945
  %v956 = vsel %vm247, %v954, 0.0
  %v957 = vsel %vm248, %v953, 0.0
  %v958 = vsel %vm249, %v952, 0.0
  %v959 = vsel %vm250, %v955, 0.0
  %960 = vst [vmem:[#allocation3 + $0x200] sm:$0xff] %v956
  %961 = vst [vmem:[#allocation3 + $0x208] sm:$0xff] %v957
  %962 = vst [vmem:[#allocation3 + $0x210] sm:$0xff] %v958
  %963 = vst [vmem:[#allocation3 + $0x218] sm:$0xff] %v959
  %964 = vrot.lane.b32.xlu0 %v518, 112
  %v965 = vpop.permute.xlu0 %964
  %966 = vrot.lane.b32.xlu0 %v519, 112
  %v967 = vpop.permute.xlu0 %966
  %968 = vrot.lane.b32.xlu0 %v520, 112
  %v969 = vpop.permute.xlu0 %968
  %970 = vrot.lane.b32.xlu0 %v521, 112
  %v971 = vpop.permute.xlu0 %970
  %v972 = vsel %vm267, %v969, %v971
  %v973 = vsel %vm267, %v967, %v969
  %v974 = vsel %vm267, %v965, %v967
  %v975 = vsel %vm267, %v971, %v965
  %v976 = vsel %vm276, %v974, 0.0
  %v977 = vsel %vm277, %v973, 0.0
  %v978 = vsel %vm278, %v972, 0.0
  %v979 = vsel %vm279, %v975, 0.0
  %980 = vst [vmem:[#allocation3 + $0x220] sm:$0xff] %v976
  %981 = vst [vmem:[#allocation3 + $0x228] sm:$0xff] %v977
  %982 = vst [vmem:[#allocation3 + $0x230] sm:$0xff] %v978
  %983 = vst [vmem:[#allocation3 + $0x238] sm:$0xff] %v979
  %984 = vrot.lane.b32.xlu0 %v518, 111
  %v985 = vpop.permute.xlu0 %984
  %986 = vrot.lane.b32.xlu0 %v519, 111
  %v987 = vpop.permute.xlu0 %986
  %988 = vrot.lane.b32.xlu0 %v520, 111
  %v989 = vpop.permute.xlu0 %988
  %990 = vrot.lane.b32.xlu0 %v521, 111
  %v991 = vpop.permute.xlu0 %990
  %v992 = vsel %vm296, %v989, %v991
  %v993 = vsel %vm296, %v987, %v989
  %v994 = vsel %vm296, %v985, %v987
  %v995 = vsel %vm296, %v991, %v985
  %v996 = vsel %vm309, %v994, 0.0
  %v997 = vsel %vm310, %v993, 0.0
  %v998 = vsel %vm311, %v992, 0.0
  %v999 = vsel %vm312, %v995, 0.0
  %1000 = vst [vmem:[#allocation3 + $0x240] sm:$0xff] %v996
  %1001 = vst [vmem:[#allocation3 + $0x248] sm:$0xff] %v997
  %1002 = vst [vmem:[#allocation3 + $0x250] sm:$0xff] %v998
  %1003 = vst [vmem:[#allocation3 + $0x258] sm:$0xff] %v999
  %1004 = vrot.lane.b32.xlu0 %v518, 110
  %v1005 = vpop.permute.xlu0 %1004
  %1006 = vrot.lane.b32.xlu0 %v519, 110
  %v1007 = vpop.permute.xlu0 %1006
  %1008 = vrot.lane.b32.xlu0 %v520, 110
  %v1009 = vpop.permute.xlu0 %1008
  %1010 = vrot.lane.b32.xlu0 %v521, 110
  %v1011 = vpop.permute.xlu0 %1010
  %vm1012 = vcmp.lt.s32.totalorder %v21, 110
  %v1013 = vsel %vm1012, %v1009, %v1011
  %v1014 = vsel %vm1012, %v1007, %v1009
  %v1015 = vsel %vm1012, %v1005, %v1007
  %v1016 = vsel %vm1012, %v1011, %v1005
  %vm1017 = vmand %vm37, %vm61
  %vm1018 = vmand %vm38, %vm62
  %vm1019 = vmand %vm39, %vm63
  %vm1020 = vmand %vm40, %vm64
  %v1021 = vsel %vm1017, 1, 0
  %v1022 = vsel %vm1018, 1, 0
  %v1023 = vsel %vm1019, 1, 0
  %v1024 = vsel %vm1020, 1, 0
  %vm1025 = vcmp.eq.s32.totalorder %v1021, 1
  %vm1026 = vcmp.eq.s32.totalorder %v1022, 1
  %vm1027 = vcmp.eq.s32.totalorder %v1023, 1
  %vm1028 = vcmp.eq.s32.totalorder %v1024, 1
  %v1029 = vsel %vm1025, %v1015, 0.0
  %v1030 = vsel %vm1026, %v1014, 0.0
  %v1031 = vsel %vm1027, %v1013, 0.0
  %v1032 = vsel %vm1028, %v1016, 0.0
  %1033 = vst [vmem:[#allocation3 + $0x260] sm:$0xff] %v1029
  %1034 = vst [vmem:[#allocation3 + $0x268] sm:$0xff] %v1030
  %1035 = vst [vmem:[#allocation3 + $0x270] sm:$0xff] %v1031
  %1036 = vst [vmem:[#allocation3 + $0x278] sm:$0xff] %v1032
  %1037 = vrot.lane.b32.xlu0 %v518, 98
  %v1038 = vpop.permute.xlu0 %1037
  %1039 = vrot.lane.b32.xlu0 %v519, 98
  %v1040 = vpop.permute.xlu0 %1039
  %1041 = vrot.lane.b32.xlu0 %v520, 98
  %v1042 = vpop.permute.xlu0 %1041
  %1043 = vrot.lane.b32.xlu0 %v521, 98
  %v1044 = vpop.permute.xlu0 %1043
  %vm1045 = vcmp.lt.s32.totalorder %v21, 98
  %v1046 = vsel %vm1045, %v1042, %v1044
  %v1047 = vsel %vm1045, %v1040, %v1042
  %v1048 = vsel %vm1045, %v1038, %v1040
  %v1049 = vsel %vm1045, %v1044, %v1038
  %vm1050 = vmand %vm53, %vm57
  %vm1051 = vmand %vm54, %vm58
  %vm1052 = vmand %vm55, %vm59
  %vm1053 = vmand %vm56, %vm60
  %v1054 = vsel %vm1050, 1, 0
  %v1055 = vsel %vm1051, 1, 0
  %v1056 = vsel %vm1052, 1, 0
  %v1057 = vsel %vm1053, 1, 0
  %vm1058 = vcmp.eq.s32.totalorder %v1054, 1
  %vm1059 = vcmp.eq.s32.totalorder %v1055, 1
  %vm1060 = vcmp.eq.s32.totalorder %v1056, 1
  %vm1061 = vcmp.eq.s32.totalorder %v1057, 1
  %v1062 = vsel %vm1058, %v1048, 0.0
  %v1063 = vsel %vm1059, %v1047, 0.0
  %v1064 = vsel %vm1060, %v1046, 0.0
  %v1065 = vsel %vm1061, %v1049, 0.0
  %1066 = vst [vmem:[#allocation3 + $0x280] sm:$0xff] %v1062
  %1067 = vst [vmem:[#allocation3 + $0x288] sm:$0xff] %v1063
  %1068 = vst [vmem:[#allocation3 + $0x290] sm:$0xff] %v1064
  %1069 = vst [vmem:[#allocation3 + $0x298] sm:$0xff] %v1065
  %1070 = vrot.lane.b32.xlu0 %v518, 97
  %v1071 = vpop.permute.xlu0 %1070
  %1072 = vrot.lane.b32.xlu0 %v519, 97
  %v1073 = vpop.permute.xlu0 %1072
  %1074 = vrot.lane.b32.xlu0 %v520, 97
  %v1075 = vpop.permute.xlu0 %1074
  %1076 = vrot.lane.b32.xlu0 %v521, 97
  %v1077 = vpop.permute.xlu0 %1076
  %vm1078 = vcmp.lt.s32.totalorder %v21, 97
  %v1079 = vsel %vm1078, %v1075, %v1077
  %v1080 = vsel %vm1078, %v1073, %v1075
  %v1081 = vsel %vm1078, %v1071, %v1073
  %v1082 = vsel %vm1078, %v1077, %v1071
  %vm1083 = vmand %vm53, %vm41
  %vm1084 = vmand %vm54, %vm42
  %vm1085 = vmand %vm55, %vm43
  %vm1086 = vmand %vm56, %vm44
  %v1087 = vsel %vm1083, 1, 0
  %v1088 = vsel %vm1084, 1, 0
  %v1089 = vsel %vm1085, 1, 0
  %v1090 = vsel %vm1086, 1, 0
  %vm1091 = vcmp.eq.s32.totalorder %v1087, 1
  %vm1092 = vcmp.eq.s32.totalorder %v1088, 1
  %vm1093 = vcmp.eq.s32.totalorder %v1089, 1
  %vm1094 = vcmp.eq.s32.totalorder %v1090, 1
  %v1095 = vsel %vm1091, %v1081, 0.0
  %v1096 = vsel %vm1092, %v1080, 0.0
  %v1097 = vsel %vm1093, %v1079, 0.0
  %v1098 = vsel %vm1094, %v1082, 0.0
  %1099 = vst [vmem:[#allocation3 + $0x2a0] sm:$0xff] %v1095
  %1100 = vst [vmem:[#allocation3 + $0x2a8] sm:$0xff] %v1096
  %1101 = vst [vmem:[#allocation3 + $0x2b0] sm:$0xff] %v1097
  %1102 = vst [vmem:[#allocation3 + $0x2b8] sm:$0xff] %v1098
  %1103 = vrot.lane.b32.xlu0 %v518, 96
  %v1104 = vpop.permute.xlu0 %1103
  %1105 = vrot.lane.b32.xlu0 %v519, 96
  %v1106 = vpop.permute.xlu0 %1105
  %1107 = vrot.lane.b32.xlu0 %v520, 96
  %v1108 = vpop.permute.xlu0 %1107
  %1109 = vrot.lane.b32.xlu0 %v521, 96
  %v1110 = vpop.permute.xlu0 %1109
  %vm1111 = vcmp.lt.s32.totalorder %v21, 96
  %v1112 = vsel %vm1111, %v1108, %v1110
  %v1113 = vsel %vm1111, %v1106, %v1108
  %v1114 = vsel %vm1111, %v1104, %v1106
  %v1115 = vsel %vm1111, %v1110, %v1104
  %v1116 = vsel %vm53, 1, 0
  %v1117 = vsel %vm54, 1, 0
  %v1118 = vsel %vm55, 1, 0
  %v1119 = vsel %vm56, 1, 0
  %vm1120 = vcmp.eq.s32.totalorder %v1116, 1
  %vm1121 = vcmp.eq.s32.totalorder %v1117, 1
  %vm1122 = vcmp.eq.s32.totalorder %v1118, 1
  %vm1123 = vcmp.eq.s32.totalorder %v1119, 1
  %v1124 = vsel %vm1120, %v1114, 0.0
  %v1125 = vsel %vm1121, %v1113, 0.0
  %v1126 = vsel %vm1122, %v1112, 0.0
  %v1127 = vsel %vm1123, %v1115, 0.0
  %1128 = vst [vmem:[#allocation3 + $0x2c0] sm:$0xff] %v1124
  %1129 = vst [vmem:[#allocation3 + $0x2c8] sm:$0xff] %v1125
  %1130 = vst [vmem:[#allocation3 + $0x2d0] sm:$0xff] %v1126
  %1131 = vst [vmem:[#allocation3 + $0x2d8] sm:$0xff] %v1127
  %1132 = vrot.lane.b32.xlu0 %v518, 95
  %v1133 = vpop.permute.xlu0 %1132
  %1134 = vrot.lane.b32.xlu0 %v519, 95
  %v1135 = vpop.permute.xlu0 %1134
  %1136 = vrot.lane.b32.xlu0 %v520, 95
  %v1137 = vpop.permute.xlu0 %1136
  %1138 = vrot.lane.b32.xlu0 %v521, 95
  %v1139 = vpop.permute.xlu0 %1138
  %vm1140 = vcmp.lt.s32.totalorder %v21, 95
  %v1141 = vsel %vm1140, %v1137, %v1139
  %v1142 = vsel %vm1140, %v1135, %v1137
  %v1143 = vsel %vm1140, %v1133, %v1135
  %v1144 = vsel %vm1140, %v1139, %v1133
  %vm1145 = vmand %vm53, %vm45
  %vm1146 = vmand %vm54, %vm46
  %vm1147 = vmand %vm55, %vm47
  %vm1148 = vmand %vm56, %vm48
  %v1149 = vsel %vm1145, 1, 0
  %v1150 = vsel %vm1146, 1, 0
  %v1151 = vsel %vm1147, 1, 0
  %v1152 = vsel %vm1148, 1, 0
  %vm1153 = vcmp.eq.s32.totalorder %v1149, 1
  %vm1154 = vcmp.eq.s32.totalorder %v1150, 1
  %vm1155 = vcmp.eq.s32.totalorder %v1151, 1
  %vm1156 = vcmp.eq.s32.totalorder %v1152, 1
  %v1157 = vsel %vm1153, %v1143, 0.0
  %v1158 = vsel %vm1154, %v1142, 0.0
  %v1159 = vsel %vm1155, %v1141, 0.0
  %v1160 = vsel %vm1156, %v1144, 0.0
  %1161 = vst [vmem:[#allocation3 + $0x2e0] sm:$0xff] %v1157
  %1162 = vst [vmem:[#allocation3 + $0x2e8] sm:$0xff] %v1158
  %1163 = vst [vmem:[#allocation3 + $0x2f0] sm:$0xff] %v1159
  %1164 = vst [vmem:[#allocation3 + $0x2f8] sm:$0xff] %v1160
  %1165 = vrot.lane.b32.xlu0 %v518, 94
  %v1166 = vpop.permute.xlu0 %1165
  %1167 = vrot.lane.b32.xlu0 %v519, 94
  %v1168 = vpop.permute.xlu0 %1167
  %1169 = vrot.lane.b32.xlu0 %v520, 94
  %v1170 = vpop.permute.xlu0 %1169
  %1171 = vrot.lane.b32.xlu0 %v521, 94
  %v1172 = vpop.permute.xlu0 %1171
  %vm1173 = vcmp.lt.s32.totalorder %v21, 94
  %v1174 = vsel %vm1173, %v1170, %v1172
  %v1175 = vsel %vm1173, %v1168, %v1170
  %v1176 = vsel %vm1173, %v1166, %v1168
  %v1177 = vsel %vm1173, %v1172, %v1166
  %vm1178 = vmand %vm53, %vm61
  %vm1179 = vmand %vm54, %vm62
  %vm1180 = vmand %vm55, %vm63
  %vm1181 = vmand %vm56, %vm64
  %v1182 = vsel %vm1178, 1, 0
  %v1183 = vsel %vm1179, 1, 0
  %v1184 = vsel %vm1180, 1, 0
  %v1185 = vsel %vm1181, 1, 0
  %vm1186 = vcmp.eq.s32.totalorder %v1182, 1
  %vm1187 = vcmp.eq.s32.totalorder %v1183, 1
  %vm1188 = vcmp.eq.s32.totalorder %v1184, 1
  %vm1189 = vcmp.eq.s32.totalorder %v1185, 1
  %v1190 = vsel %vm1186, %v1176, 0.0
  %v1191 = vsel %vm1187, %v1175, 0.0
  %v1192 = vsel %vm1188, %v1174, 0.0
  %v1193 = vsel %vm1189, %v1177, 0.0
  %1194 = vst [vmem:[#allocation3 + $0x300] sm:$0xff] %v1190
  %1195 = vst [vmem:[#allocation3 + $0x308] sm:$0xff] %v1191
  %1196 = vst [vmem:[#allocation3 + $0x310] sm:$0xff] %v1192
  %1197 = vst [vmem:[#allocation3 + $0x318] sm:$0xff] %v1193
  %v1198 = vld [vmem:[%s3] sm:$0xff]
  %v1199 = vld [vmem:[%s3 + $0x8] sm:$0xff]
  %v1200 = vld [vmem:[#allocation3] sm:$0xff]
  %v1201 = vld [vmem:[#allocation3 + $0x8] sm:$0xff]
  %v1202 = vld [vmem:[#allocation3 + $0x10] sm:$0xff]
  %v1203 = vld [vmem:[#allocation3 + $0x18] sm:$0xff]
  %v1204 = vld [vmem:[#allocation3 + $0x20] sm:$0xff]
  %v1205 = vld [vmem:[#allocation3 + $0x28] sm:$0xff]
  %v1206 = vld [vmem:[#allocation3 + $0x30] sm:$0xff]
  %v1207 = vld [vmem:[#allocation3 + $0x38] sm:$0xff]
  %v1208 = vld [vmem:[#allocation3 + $0x40] sm:$0xff]
  %v1209 = vld [vmem:[#allocation3 + $0x48] sm:$0xff]
  %v1210 = vld [vmem:[#allocation3 + $0x50] sm:$0xff]
  %v1211 = vld [vmem:[#allocation3 + $0x58] sm:$0xff]
  %v1212 = vld [vmem:[#allocation3 + $0x60] sm:$0xff]
  %v1213 = vld [vmem:[#allocation3 + $0x68] sm:$0xff]
  %v1214 = vld [vmem:[#allocation3 + $0x70] sm:$0xff]
  %v1215 = vld [vmem:[#allocation3 + $0x78] sm:$0xff]
  %v1216 = vld [vmem:[#allocation3 + $0x80] sm:$0xff]
  %v1217 = vld [vmem:[#allocation3 + $0x88] sm:$0xff]
  %v1218 = vld [vmem:[#allocation3 + $0x90] sm:$0xff]
  %v1219 = vld [vmem:[#allocation3 + $0x98] sm:$0xff]
  %v1220 = vld [vmem:[#allocation3 + $0xa0] sm:$0xff]
  %v1221 = vld [vmem:[#allocation3 + $0xa8] sm:$0xff]
  %v1222 = vld [vmem:[#allocation3 + $0xb0] sm:$0xff]
  %v1223 = vld [vmem:[#allocation3 + $0xb8] sm:$0xff]
  %v1224 = vld [vmem:[#allocation3 + $0xc0] sm:$0xff]
  %v1225 = vld [vmem:[#allocation3 + $0xc8] sm:$0xff]
  %v1226 = vld [vmem:[#allocation3 + $0xd0] sm:$0xff]
  %v1227 = vld [vmem:[#allocation3 + $0xd8] sm:$0xff]
  %v1228 = vld [vmem:[#allocation3 + $0xe0] sm:$0xff]
  %v1229 = vld [vmem:[#allocation3 + $0xe8] sm:$0xff]
  %v1230 = vld [vmem:[#allocation3 + $0xf0] sm:$0xff]
  %v1231 = vld [vmem:[#allocation3 + $0xf8] sm:$0xff]
  %v1232 = vld [vmem:[#allocation3 + $0x100] sm:$0xff]
  %v1233 = vld [vmem:[#allocation3 + $0x108] sm:$0xff]
  %v1234 = vld [vmem:[#allocation3 + $0x110] sm:$0xff]
  %v1235 = vld [vmem:[#allocation3 + $0x118] sm:$0xff]
  %v1236 = vld [vmem:[#allocation3 + $0x120] sm:$0xff]
  %v1237 = vld [vmem:[#allocation3 + $0x128] sm:$0xff]
  %v1238 = vld [vmem:[#allocation3 + $0x130] sm:$0xff]
  %v1239 = vld [vmem:[#allocation3 + $0x138] sm:$0xff]
  %v1240 = vld [vmem:[#allocation3 + $0x140] sm:$0xff]
  %v1241 = vld [vmem:[#allocation3 + $0x148] sm:$0xff]
  %v1242 = vld [vmem:[#allocation3 + $0x150] sm:$0xff]
  %v1243 = vld [vmem:[#allocation3 + $0x158] sm:$0xff]
  %v1244 = vld [vmem:[#allocation3 + $0x160] sm:$0xff]
  %v1245 = vld [vmem:[#allocation3 + $0x168] sm:$0xff]
  %v1246 = vld [vmem:[#allocation3 + $0x170] sm:$0xff]
  %v1247 = vld [vmem:[#allocation3 + $0x178] sm:$0xff]
  %v1248 = vld [vmem:[#allocation3 + $0x180] sm:$0xff]
  %v1249 = vld [vmem:[#allocation3 + $0x188] sm:$0xff]
  %v1250 = vld [vmem:[#allocation3 + $0x190] sm:$0xff]
  %v1251 = vld [vmem:[#allocation3 + $0x198] sm:$0xff]
  %v1252 = vld [vmem:[#allocation3 + $0x1a0] sm:$0xff]
  %v1253 = vld [vmem:[#allocation3 + $0x1a8] sm:$0xff]
  %v1254 = vld [vmem:[#allocation3 + $0x1b0] sm:$0xff]
  %v1255 = vld [vmem:[#allocation3 + $0x1b8] sm:$0xff]
  %v1256 = vld [vmem:[#allocation3 + $0x1c0] sm:$0xff]
  %v1257 = vld [vmem:[#allocation3 + $0x1c8] sm:$0xff]
  %v1258 = vld [vmem:[#allocation3 + $0x1d0] sm:$0xff]
  %v1259 = vld [vmem:[#allocation3 + $0x1d8] sm:$0xff]
  %v1260 = vld [vmem:[#allocation3 + $0x1e0] sm:$0xff]
  %v1261 = vld [vmem:[#allocation3 + $0x1e8] sm:$0xff]
  %v1262 = vld [vmem:[#allocation3 + $0x1f0] sm:$0xff]
  %v1263 = vld [vmem:[#allocation3 + $0x1f8] sm:$0xff]
  %v1264 = vld [vmem:[#allocation3 + $0x200] sm:$0xff]
  %v1265 = vld [vmem:[#allocation3 + $0x208] sm:$0xff]
  %v1266 = vld [vmem:[#allocation3 + $0x210] sm:$0xff]
  %v1267 = vld [vmem:[#allocation3 + $0x218] sm:$0xff]
  %v1268 = vld [vmem:[#allocation3 + $0x220] sm:$0xff]
  %v1269 = vld [vmem:[#allocation3 + $0x228] sm:$0xff]
  %v1270 = vld [vmem:[#allocation3 + $0x230] sm:$0xff]
  %v1271 = vld [vmem:[#allocation3 + $0x238] sm:$0xff]
  %v1272 = vld [vmem:[#allocation3 + $0x240] sm:$0xff]
  %v1273 = vld [vmem:[#allocation3 + $0x248] sm:$0xff]
  %v1274 = vld [vmem:[#allocation3 + $0x250] sm:$0xff]
  %v1275 = vld [vmem:[#allocation3 + $0x258] sm:$0xff]
  %v1276 = vld [vmem:[#allocation3 + $0x260] sm:$0xff]
  %v1277 = vld [vmem:[#allocation3 + $0x268] sm:$0xff]
  %v1278 = vld [vmem:[#allocation3 + $0x270] sm:$0xff]
  %v1279 = vld [vmem:[#allocation3 + $0x278] sm:$0xff]
  %v1280 = vld [vmem:[#allocation3 + $0x280] sm:$0xff]
  %v1281 = vld [vmem:[#allocation3 + $0x288] sm:$0xff]
  %v1282 = vld [vmem:[#allocation3 + $0x290] sm:$0xff]
  %v1283 = vld [vmem:[#allocation3 + $0x298] sm:$0xff]
  %v1284 = vld [vmem:[#allocation3 + $0x2a0] sm:$0xff]
  %v1285 = vld [vmem:[#allocation3 + $0x2a8] sm:$0xff]
  %v1286 = vld [vmem:[#allocation3 + $0x2b0] sm:$0xff]
  %v1287 = vld [vmem:[#allocation3 + $0x2b8] sm:$0xff]
  %v1288 = vld [vmem:[#allocation3 + $0x2c0] sm:$0xff]
  %v1289 = vld [vmem:[#allocation3 + $0x2c8] sm:$0xff]
  %v1290 = vld [vmem:[#allocation3 + $0x2d0] sm:$0xff]
  %v1291 = vld [vmem:[#allocation3 + $0x2d8] sm:$0xff]
  %v1292 = vld [vmem:[#allocation3 + $0x2e0] sm:$0xff]
  %v1293 = vld [vmem:[#allocation3 + $0x2e8] sm:$0xff]
  %v1294 = vld [vmem:[#allocation3 + $0x2f0] sm:$0xff]
  %v1295 = vld [vmem:[#allocation3 + $0x2f8] sm:$0xff]
  %v1296 = vld [vmem:[#allocation3 + $0x300] sm:$0xff]
  %v1297 = vld [vmem:[#allocation3 + $0x308] sm:$0xff]
  %v1298 = vld [vmem:[#allocation3 + $0x310] sm:$0xff]
  %v1299 = vld [vmem:[#allocation3 + $0x318] sm:$0xff]
  %v1300 = vld [vmem:[%s4] sm:$0xff]
  %1302 = vset.pattern.permute.xlu0 0
  %1303 = vperm.xlu0 %1302, %v1300
  %v1304 = vpop.permute.xlu0 %1303
  %v1307 = vsel %vm364, %v1199, 0
  %1309 = vmatprep.subr.mxu0 %v1201
  %1310 = vmatpush1.msra.mxu0 %v1200
  %1311 = vmatprep.subr.mxu0 %v1205
  %1312 = vmatpush1.msra.mxu0 %v1204
  %1313 = vmatprep.subr.mxu0 %v1209
  %1314 = vmatpush1.msra.mxu0 %v1208
  %1315 = vmatprep.subr.mxu0 %v1213
  %1316 = vmatpush1.msra.mxu0 %v1212
  %1317 = vmatprep.subr.mxu0 %v1217
  %1318 = vmatpush1.msra.mxu0 %v1216
  %1319 = vmatprep.subr.mxu0 %v1221
  %1320 = vmatpush1.msra.mxu0 %v1220
  %1321 = vmatprep.subr.mxu0 %v1225
  %1322 = vmatpush1.msra.mxu0 %v1224
  %1323 = vmatprep.subr.mxu0 %v1229
  %1324 = vmatpush1.msra.mxu0 %v1228
  %1325 = vmatprep.subr.mxu0 %v1233
  %1326 = vmatpush1.msra.mxu0 %v1232
  %1327 = vmatprep.subr.mxu0 %v1237
  %1328 = vmatpush1.msra.mxu0 %v1236
  %1329 = vmatprep.subr.mxu0 %v1241
  %1330 = vmatpush1.msra.mxu0 %v1240
  %1331 = vmatprep.subr.mxu0 %v1245
  %1332 = vmatpush1.msra.mxu0 %v1244
  %1333 = vmatprep.subr.mxu0 %v1249
  %1334 = vmatpush1.msra.mxu0 %v1248
  %1335 = vmatprep.subr.mxu0 %v1253
  %1336 = vmatpush1.msra.mxu0 %v1252
  %1337 = vmatprep.subr.mxu0 %v1257
  %1338 = vmatpush1.msra.mxu0 %v1256
  %1339 = vmatprep.subr.mxu0 %v1261
  %1340 = vmatpush1.msra.mxu0 %v1260
  %1341 = vmatprep.subr.mxu0 %v1265
  %1342 = vmatpush1.msra.mxu0 %v1264
  %1343 = vmatprep.subr.mxu0 %v1269
  %1344 = vmatpush1.msra.mxu0 %v1268
  %1345 = vmatprep.subr.mxu0 %v1273
  %1346 = vmatpush1.msra.mxu0 %v1272
  %1347 = vmatprep.subr.mxu0 %v1277
  %1348 = vmatpush1.msra.mxu0 %v1276
  %1349 = vmatprep.subr.mxu0 %v1281
  %1350 = vmatpush1.msra.mxu0 %v1280
  %1351 = vmatprep.subr.mxu0 %v1285
  %1352 = vmatpush1.msra.mxu0 %v1284
  %1353 = vmatprep.subr.mxu0 %v1289
  %1354 = vmatpush1.msra.mxu0 %v1288
  %1355 = vmatprep.subr.mxu0 %v1293
  %1356 = vmatpush1.msra.mxu0 %v1292
  %1357 = vmatprep.subr.mxu0 %v1297
  %1358 = vmatpush1.msra.mxu0 %v1296
  %1359 = vmatprep.subr.mxu0 0.0
  %1360 = vmatpush1.msra.mxu0 0.0
  %1361 = vmatprep.subr.mxu0 0.0
  %1362 = vmatpush1.msra.mxu0 0.0
  %1363 = vmatprep.subr.mxu0 0.0
  %1364 = vmatpush1.msra.mxu0 0.0
  %1365 = vmatprep.subr.mxu0 0.0
  %1366 = vmatpush1.msra.mxu0 0.0
  %1367 = vmatprep.subr.mxu0 0.0
  %1368 = vmatpush1.msra.mxu0 0.0
  %1369 = vmatprep.subr.mxu0 0.0
  %1370 = vmatpush1.msra.mxu0 0.0
  %1371 = vmatprep.subr.mxu0 0.0
  %1372 = vmatpush1.msra.mxu0 0.0
  %1373 = vmatprep.mubr.f32.mxu0 %v1307
  %1374 = vmatmul.mubr.f32.gmra.mrb[0].mxu0 %v1198
  %v1375 = vpop.f32.mrb[0].mxu0
  %v1376 = vadd.f32 %v1304, %v1375
  %v1377 = vpop.f32.mrb[0].mxu0
  %v1378 = vadd.f32 %v1304, %v1377
  %1379 = vdwg.mxu0
  %1380 = vmatprep.subr.mxu0 %v1203
  %1381 = vmatpush1.msra.mxu0 %v1202
  %1382 = vmatprep.subr.mxu0 %v1207
  %1383 = vmatpush1.msra.mxu0 %v1206
  %1384 = vmatprep.subr.mxu0 %v1211
  %1385 = vmatpush1.msra.mxu0 %v1210
  %1386 = vmatprep.subr.mxu0 %v1215
  %1387 = vmatpush1.msra.mxu0 %v1214
  %1388 = vmatprep.subr.mxu0 %v1219
  %1389 = vmatpush1.msra.mxu0 %v1218
  %1390 = vmatprep.subr.mxu0 %v1223
  %1391 = vmatpush1.msra.mxu0 %v1222
  %1392 = vmatprep.subr.mxu0 %v1227
  %1393 = vmatpush1.msra.mxu0 %v1226
  %1394 = vmatprep.subr.mxu0 %v1231
  %1395 = vmatpush1.msra.mxu0 %v1230
  %1396 = vmatprep.subr.mxu0 %v1235
  %1397 = vmatpush1.msra.mxu0 %v1234
  %1398 = vmatprep.subr.mxu0 %v1239
  %1399 = vmatpush1.msra.mxu0 %v1238
  %1400 = vmatprep.subr.mxu0 %v1243
  %1401 = vmatpush1.msra.mxu0 %v1242
  %1402 = vmatprep.subr.mxu0 %v1247
  %1403 = vmatpush1.msra.mxu0 %v1246
  %1404 = vmatprep.subr.mxu0 %v1251
  %1405 = vmatpush1.msra.mxu0 %v1250
  %1406 = vmatprep.subr.mxu0 %v1255
  %1407 = vmatpush1.msra.mxu0 %v1254
  %1408 = vmatprep.subr.mxu0 %v1259
  %1409 = vmatpush1.msra.mxu0 %v1258
  %1410 = vmatprep.subr.mxu0 %v1263
  %1411 = vmatpush1.msra.mxu0 %v1262
  %1412 = vmatprep.subr.mxu0 %v1267
  %1413 = vmatpush1.msra.mxu0 %v1266
  %1414 = vmatprep.subr.mxu0 %v1271
  %1415 = vmatpush1.msra.mxu0 %v1270
  %1416 = vmatprep.subr.mxu0 %v1275
  %1417 = vmatpush1.msra.mxu0 %v1274
  %1418 = vmatprep.subr.mxu0 %v1279
  %1419 = vmatpush1.msra.mxu0 %v1278
  %1420 = vmatprep.subr.mxu0 %v1283
  %1421 = vmatpush1.msra.mxu0 %v1282
  %1422 = vmatprep.subr.mxu0 %v1287
  %1423 = vmatpush1.msra.mxu0 %v1286
  %1424 = vmatprep.subr.mxu0 %v1291
  %1425 = vmatpush1.msra.mxu0 %v1290
  %1426 = vmatprep.subr.mxu0 %v1295
  %1427 = vmatpush1.msra.mxu0 %v1294
  %1428 = vmatprep.subr.mxu0 %v1299
  %1429 = vmatpush1.msra.mxu0 %v1298
  %1430 = vmatprep.subr.mxu0 0.0
  %1431 = vmatpush1.msra.mxu0 0.0
  %1432 = vmatprep.subr.mxu0 0.0
  %1433 = vmatpush1.msra.mxu0 0.0
  %1434 = vmatprep.subr.mxu0 0.0
  %1435 = vmatpush1.msra.mxu0 0.0
  %1436 = vmatprep.subr.mxu0 0.0
  %1437 = vmatpush1.msra.mxu0 0.0
  %1438 = vmatprep.subr.mxu0 0.0
  %1439 = vmatpush1.msra.mxu0 0.0
  %1440 = vmatprep.subr.mxu0 0.0
  %1441 = vmatpush1.msra.mxu0 0.0
  %1442 = vmatprep.subr.mxu0 0.0
  %1443 = vmatpush1.msra.mxu0 0.0
  %1444 = vmatprep.mubr.f32.mxu0 %v1307
  %1445 = vmatmul.mubr.f32.gmra.mrb[0].mxu0 %v1198
  %v1446 = vpop.f32.mrb[0].mxu0
  %v1447 = vadd.f32 %v1304, %v1446
  %v1448 = vpop.f32.mrb[0].mxu0
  %v1449 = vadd.f32 %v1304, %v1448
  %1450 = vdwg.mxu0
  %v1451 = vmax.f32 %v1376, 0.0
  %v1452 = vmax.f32 %v1378, 0.0
  %v1453 = vmax.f32 %v1447, 0.0
  %v1454 = vmax.f32 %v1449, 0.0
  %v1455 = vadd.f32 %v1451, %v518
  %v1456 = vadd.f32 %v1452, %v519
  %v1457 = vadd.f32 %v1453, %v520
  %v1458 = vadd.f32 %v1454, %v521
  %v1459 = vmax.f32 %v1455, 0.0
  %v1460 = vmax.f32 %v1456, 0.0
  %v1461 = vmax.f32 %v1457, 0.0
  %v1462 = vmax.f32 %v1458, 0.0
  %1463 = vst [vmem:[%s5] sm:$0xff] %v1459
  %1464 = vst [vmem:[%s5 + $0x8] sm:$0xff] %v1460
  %1465 = vst [vmem:[%s5 + $0x10] sm:$0xff] %v1461
  %1466 = vst [vmem:[%s5 + $0x18] sm:$0xff] %v1462
  // Predicated region
  $region22: #{mkrb_forward.1} parent=0 // pred_check
    _
  $region23: #{mkrb_forward.1} parent=0 // pred_check_branch
    %1468 = sbr.rel (0) target = $region25
  $region24: #{mkrb_forward.1} parent=0 // pred_region
    _
  $region25: #{mkrb_forward.1} parent=0 // pred_fallthru
    _
  // Predicated region
  $region26: #{mkrb_forward.1} parent=0 // pred_check
    _
  $region27: #{mkrb_forward.1} parent=0 // pred_check_branch
    %1470 = sbr.rel (0) target = $region29
  $region28: #{mkrb_forward.1} parent=0 // pred_region
    _
  $region29: #{mkrb_forward.1} parent=0 // pred_fallthru
    _

</llo_original>
